<compile_context>
chip_gen: v5e
topology: v5e:2x2
jax: 0.10.0
libtpu: 0.0.40
codegen_flags: <defaults>
</compile_context>

<pallas_src>
import functools
import math

import jax
import jax.numpy as jnp
from jax.experimental import pallas as pl
from jax.experimental.pallas import tpu as pltpu


def _hard_sigmoid(x):
    # PyTorch: threshold(-(0.2x+0.5), -1, -1) -> threshold(-(that), 0, 0)
    #        == clip(0.2*x + 0.5, 0, 1)
    return jnp.clip(0.2 * x + 0.5, 0.0, 1.0)


def _round_up(x, m):
    return (x + m - 1) // m * m


def _convlstm_cell_kernel(flat_ref, w_ref, b_ref, c_ref, h_out_ref, c_out_ref,
                          *, kernel_size, pad, Wp, guard, n_out, hidden_dim):
    """One grid step == one batch element: in-VMEM im2col + one MXU matmul + gating.

    flat_ref : (1, C, Lext)   bf16  zero-padded image, padded-spatial flattened on
                                    lanes, `guard` extra zero lanes on the left so
                                    every tap is a non-negative static lane offset.
    w_ref    : (4*Chid, K*K*C) bf16 grid-resident
    b_ref    : (4*Chid, 1)     f32  grid-resident
    c_ref    : (1, Chid, Npad) f32  c_cur in padded-flat layout
    outputs  : (1, Chid, Npad) f32  h_next, c_next in padded-flat layout
    """
    K = kernel_size
    xp = flat_ref[0]                                       # (C, Lext) bf16

    # In-VMEM im2col: tap (dy, dx) of the padded image is a constant lane shift
    # (dy-pad)*Wp + (dx-pad) of the flattened padded row.  Concatenate all K*K
    # taps along sublanes so ONE matmul contracts over the full K*K*C depth.
    taps = []
    for dy in range(K):
        for dx in range(K):
            off = guard + (dy - pad) * Wp + (dx - pad)     # static, >= 0
            taps.append(xp[:, off:off + n_out])            # (C, Npad) bf16
    patches = jnp.concatenate(taps, axis=0)                # (K*K*C, Npad) bf16

    # Conv2d as one MXU matmul: bf16 operands, f32 accumulation.
    gates = jnp.dot(w_ref[...], patches,
                    preferred_element_type=jnp.float32)    # (4*Chid, Npad) f32
    gates = gates + b_ref[...]                             # bias, lane broadcast

    hd = hidden_dim                                         # gate chunks: sublane slices
    in_gate   = _hard_sigmoid(gates[0 * hd:1 * hd, :])
    rem_gate  = _hard_sigmoid(gates[1 * hd:2 * hd, :])
    out_gate  = _hard_sigmoid(gates[2 * hd:3 * hd, :])
    cell_gate = jnp.tanh(gates[3 * hd:4 * hd, :])

    c_cur = c_ref[0]                                        # (Chid, Npad) f32
    c_next = rem_gate * c_cur + in_gate * cell_gate
    h_next = out_gate * jnp.tanh(c_next)

    h_out_ref[0] = h_next.astype(h_out_ref.dtype)           # full-lane stores
    c_out_ref[0] = c_next.astype(c_out_ref.dtype)


def conv_lstm_cell(x, h_cur, c_cur, weight, bias, kernel_size):
    """Pallas equivalent of ConvLSTMCell.forward.

    x:      [B, Cin,  H, W]   (NCHW, like PyTorch)
    h_cur:  [B, Chid, H, W]
    c_cur:  [B, Chid, H, W]
    weight: [4*Chid, Cin+Chid, K, K]  (PyTorch Conv2d OIHW layout)
    bias:   [4*Chid]
    returns (h_next, c_next), both [B, Chid, H, W]
    """
    B, Cin, H, W = x.shape
    Chid = h_cur.shape[1]
    K = kernel_size
    assert K % 2 == 1, "ConvLSTMCell assumes odd kernel_size (padding = K // 2)"
    pad = K // 2
    C = Cin + Chid
    C4 = 4 * Chid
    Hp, Wp = H + 2 * pad, W + 2 * pad
    HpWp = Hp * Wp
    KKC = K * K * C

    n_out = _round_up(HpWp, 128)          # lane width of padded-flat compute domain
    guard = pad * Wp + pad                # largest negative tap shift
    Lext = _round_up(2 * guard + n_out, 128)

    # ---- wrapper plumbing (cheap: ~1x activation bytes; NO im2col in HBM) ----
    combined = jnp.concatenate([x, h_cur], axis=1)                        # [B,C,H,W]
    comb_pad = jnp.pad(combined, ((0, 0), (0, 0), (pad, pad), (pad, pad)))
    flat = comb_pad.reshape(B, C, HpWp)
    flat_ext = jnp.pad(flat, ((0, 0), (0, 0), (guard, Lext - guard - HpWp)))
    flat_ext = flat_ext.astype(jnp.bfloat16)                              # [B,C,Lext]

    # Weight OIHW -> (out, (ky, kx, c)) matching the tap ordering above; bf16.
    w2 = jnp.transpose(weight, (0, 2, 3, 1)).reshape(C4, KKC).astype(jnp.bfloat16)
    b2 = bias.reshape(C4, 1).astype(jnp.float32)

    # c_cur in the same padded-flat layout (kept f32: full-precision state).
    c_pad = jnp.pad(c_cur, ((0, 0), (0, 0), (pad, pad), (pad, pad)))
    c_flat = jnp.pad(c_pad.reshape(B, Chid, HpWp),
                     ((0, 0), (0, 0), (0, n_out - HpWp))).astype(jnp.float32)

    kernel = functools.partial(
        _convlstm_cell_kernel, kernel_size=K, pad=pad, Wp=Wp,
        guard=guard, n_out=n_out, hidden_dim=Chid)

    cost = pl.CostEstimate(
        flops=2 * B * C4 * KKC * n_out,
        transcendentals=2 * B * Chid * n_out,      # tanh(cell_gate), tanh(c_next)
        bytes_accessed=(2 * B * C * Lext            # bf16 image rows
                        + 2 * KKC * C4 + 4 * C4     # bf16 weight + f32 bias
                        + 4 * 3 * B * Chid * n_out),  # f32 c_in + h_out + c_out
    )

    h_flat, c_next_flat = pl.pallas_call(
        kernel,
        out_shape=(
            jax.ShapeDtypeStruct((B, Chid, n_out), jnp.float32),
            jax.ShapeDtypeStruct((B, Chid, n_out), jnp.float32),
        ),
        grid_spec=pltpu.PrefetchScalarGridSpec(
            num_scalar_prefetch=0,
            grid=(B,),
            in_specs=[
                pl.BlockSpec((1, C, Lext),     lambda b: (b, 0, 0)),   # image row b
                pl.BlockSpec((C4, KKC),        lambda b: (0, 0)),      # weight (resident)
                pl.BlockSpec((C4, 1),          lambda b: (0, 0)),      # bias   (resident)
                pl.BlockSpec((1, Chid, n_out), lambda b: (b, 0, 0)),   # c_cur[b]
            ],
            out_specs=(
                pl.BlockSpec((1, Chid, n_out), lambda b: (b, 0, 0)),
                pl.BlockSpec((1, Chid, n_out), lambda b: (b, 0, 0)),
            ),
        ),
        compiler_params=pltpu.CompilerParams(
            dimension_semantics=("parallel",)),
        cost_estimate=cost,
    )(flat_ext, w2, b2, c_flat)

    # Back to NCHW: just drop the halo ring (pure slicing, no transposes).
    def unflatten(t):
        t = t[:, :, :HpWp].reshape(B, Chid, Hp, Wp)
        return t[:, :, pad:pad + H, pad:pad + W]

    h_next = unflatten(h_flat).astype(x.dtype)
    c_next = unflatten(c_next_flat).astype(x.dtype)
    return h_next, c_next


# ----------------------------- pure-JAX reference -----------------------------
def _reference(x, h_cur, c_cur, weight, bias, kernel_size):
    pad = kernel_size // 2
    combined = jnp.concatenate([x, h_cur], axis=1)
    gates = jax.lax.conv_general_dilated(
        combined, weight, window_strides=(1, 1),
        padding=((pad, pad), (pad, pad)),
        dimension_numbers=('NCHW', 'OIHW', 'NCHW'))
    gates = gates + bias[None, :, None, None]
    hd = c_cur.shape[1]
    i = jnp.clip(0.2 * gates[:, 0 * hd:1 * hd] + 0.5, 0.0, 1.0)
    r = jnp.clip(0.2 * gates[:, 1 * hd:2 * hd] + 0.5, 0.0, 1.0)
    o = jnp.clip(0.2 * gates[:, 2 * hd:3 * hd] + 0.5, 0.0, 1.0)
    g = jnp.tanh(gates[:, 3 * hd:4 * hd])
    c_next = r * c_cur + i * g
    h_next = o * jnp.tanh(c_next)
    return h_next, c_next


if __name__ == "__main__":
    key = jax.random.PRNGKey(0)
    k1, k2, k3, k4, k5 = jax.random.split(key, 5)

    # Small shapes consistent with the module.
    B, Cin, Chid, H, W, K = 2, 4, 32, 16, 16, 3

    x = jax.random.normal(k1, (B, Cin, H, W), dtype=jnp.float32)
    h_cur = jax.random.normal(k2, (B, Chid, H, W), dtype=jnp.float32)
    c_cur = jax.random.normal(k3, (B, Chid, H, W), dtype=jnp.float32)
    # Conv2d(Cin+Chid -> 4*Chid, K, padding=K//2) parameters (torch-like init scale)
    fan_in = (Cin + Chid) * K * K
    scale = 1.0 / math.sqrt(fan_in)
    weight = scale * jax.random.normal(k4, (4 * Chid, Cin + Chid, K, K),
                                       dtype=jnp.float32)
    bias = scale * jax.random.normal(k5, (4 * Chid,), dtype=jnp.float32)

    h_next, c_next = conv_lstm_cell(x, h_cur, c_cur, weight, bias, K)
    h_next = jax.block_until_ready(h_next)
    c_next = jax.block_until_ready(c_next)

    h_expect, c_expect = _reference(x, h_cur, c_cur, weight, bias, K)
    assert h_next.shape == (B, Chid, H, W) and c_next.shape == (B, Chid, H, W)
    # bf16 MXU operands with f32 accumulation vs. the f32 reference -> ~1e-2 level.
    assert jnp.allclose(h_next, h_expect, rtol=3e-2, atol=3e-2), "hidden mismatch"
    assert jnp.allclose(c_next, c_expect, rtol=3e-2, atol=3e-2), "cell mismatch"

    print("KERNEL_OK")
</pallas_src>

<mosaic_0001>
module attributes {stable_mosaic.version = 11 : i64} {
  func.func @_convlstm_cell_kernel(%arg0: i32, %arg1: memref<1x36x512xbf16, #tpu.memory_space<vmem>>, %arg2: memref<128x324xbf16, #tpu.memory_space<vmem>>, %arg3: memref<128x1xf32, #tpu.memory_space<vmem>>, %arg4: memref<1x32x384xf32, #tpu.memory_space<vmem>>, %arg5: memref<1x32x384xf32, #tpu.memory_space<vmem>>, %arg6: memref<1x32x384xf32, #tpu.memory_space<vmem>>) attributes {dimension_semantics = [#tpu.dimension_semantics<parallel>], iteration_bounds = array<i64: 2>, scalar_prefetch = 0 : i64, scratch_operands = 0 : i64, tpu.core_type = #tpu.core_type<tc>, window_params = [{transform_indices = @transform_0, window_bounds = array<i64: 1, 36, 512>}, {pipeline_mode = #tpu.pipeline_mode<synchronous>, transform_indices = @transform_1, window_bounds = array<i64: 128, 324>}, {pipeline_mode = #tpu.pipeline_mode<synchronous>, transform_indices = @transform_2, window_bounds = array<i64: 128, 1>}, {transform_indices = @transform_3, window_bounds = array<i64: 1, 32, 384>}, {transform_indices = @transform_4, window_bounds = array<i64: 1, 32, 384>}, {transform_indices = @transform_5, window_bounds = array<i64: 1, 32, 384>}]} {
    %c0 = arith.constant 0 : index
    %c0_0 = arith.constant 0 : index
    %c0_1 = arith.constant 0 : index
    %0 = vector.load %arg1[%c0, %c0_0, %c0_1] : memref<1x36x512xbf16, #tpu.memory_space<vmem>>, vector<1x36x512xbf16>
    %1 = vector.shape_cast %0 : vector<1x36x512xbf16> to vector<36x512xbf16>
    %2 = vector.extract_strided_slice %1 {offsets = [0, 0], sizes = [36, 384], strides = [1, 1]} : vector<36x512xbf16> to vector<36x384xbf16>
    %3 = vector.extract_strided_slice %1 {offsets = [0, 1], sizes = [36, 384], strides = [1, 1]} : vector<36x512xbf16> to vector<36x384xbf16>
    %4 = vector.extract_strided_slice %1 {offsets = [0, 2], sizes = [36, 384], strides = [1, 1]} : vector<36x512xbf16> to vector<36x384xbf16>
    %5 = vector.extract_strided_slice %1 {offsets = [0, 18], sizes = [36, 384], strides = [1, 1]} : vector<36x512xbf16> to vector<36x384xbf16>
    %6 = vector.extract_strided_slice %1 {offsets = [0, 19], sizes = [36, 384], strides = [1, 1]} : vector<36x512xbf16> to vector<36x384xbf16>
    %7 = vector.extract_strided_slice %1 {offsets = [0, 20], sizes = [36, 384], strides = [1, 1]} : vector<36x512xbf16> to vector<36x384xbf16>
    %8 = vector.extract_strided_slice %1 {offsets = [0, 36], sizes = [36, 384], strides = [1, 1]} : vector<36x512xbf16> to vector<36x384xbf16>
    %9 = vector.extract_strided_slice %1 {offsets = [0, 37], sizes = [36, 384], strides = [1, 1]} : vector<36x512xbf16> to vector<36x384xbf16>
    %10 = vector.extract_strided_slice %1 {offsets = [0, 38], sizes = [36, 384], strides = [1, 1]} : vector<36x512xbf16> to vector<36x384xbf16>
    %11 = tpu.concatenate %2, %3, %4, %5, %6, %7, %8, %9, %10 in 0 : vector<36x384xbf16>, vector<36x384xbf16>, vector<36x384xbf16>, vector<36x384xbf16>, vector<36x384xbf16>, vector<36x384xbf16>, vector<36x384xbf16>, vector<36x384xbf16>, vector<36x384xbf16> -> vector<324x384xbf16>
    %c0_2 = arith.constant 0 : index
    %c0_3 = arith.constant 0 : index
    %12 = vector.load %arg2[%c0_2, %c0_3] : memref<128x324xbf16, #tpu.memory_space<vmem>>, vector<128x324xbf16>
    %cst = arith.constant dense<0.000000e+00> : vector<128x384xf32>
    %13 = tpu.matmul %12, %11, %cst {dimension_numbers = #tpu.dot_dimension_numbers<[1], [0], [0], [1], [0, 0, 1, 1], [], []>} : vector<128x324xbf16>, vector<324x384xbf16>, vector<128x384xf32> -> vector<128x384xf32>
    %c0_4 = arith.constant 0 : index
    %c0_5 = arith.constant 0 : index
    %14 = vector.load %arg3[%c0_4, %c0_5] : memref<128x1xf32, #tpu.memory_space<vmem>>, vector<128x1xf32>
    %15 = vector.broadcast %14 : vector<128x1xf32> to vector<128x384xf32>
    %16 = arith.addf %13, %15 : vector<128x384xf32>
    %17 = vector.extract_strided_slice %16 {offsets = [0, 0], sizes = [32, 384], strides = [1, 1]} : vector<128x384xf32> to vector<32x384xf32>
    %cst_6 = arith.constant 2.000000e-01 : f32
    %18 = vector.broadcast %cst_6 : f32 to vector<32x384xf32>
    %19 = arith.mulf %18, %17 : vector<32x384xf32>
    %cst_7 = arith.constant 5.000000e-01 : f32
    %20 = vector.broadcast %cst_7 : f32 to vector<32x384xf32>
    %21 = arith.addf %19, %20 : vector<32x384xf32>
    %cst_8 = arith.constant 0.000000e+00 : f32
    %cst_9 = arith.constant 1.000000e+00 : f32
    %22 = vector.broadcast %cst_8 : f32 to vector<32x384xf32>
    %23 = arith.maximumf %22, %21 : vector<32x384xf32>
    %24 = vector.broadcast %cst_9 : f32 to vector<32x384xf32>
    %25 = arith.minimumf %24, %23 : vector<32x384xf32>
    %26 = vector.extract_strided_slice %16 {offsets = [32, 0], sizes = [32, 384], strides = [1, 1]} : vector<128x384xf32> to vector<32x384xf32>
    %cst_10 = arith.constant 2.000000e-01 : f32
    %27 = vector.broadcast %cst_10 : f32 to vector<32x384xf32>
    %28 = arith.mulf %27, %26 : vector<32x384xf32>
    %cst_11 = arith.constant 5.000000e-01 : f32
    %29 = vector.broadcast %cst_11 : f32 to vector<32x384xf32>
    %30 = arith.addf %28, %29 : vector<32x384xf32>
    %cst_12 = arith.constant 0.000000e+00 : f32
    %cst_13 = arith.constant 1.000000e+00 : f32
    %31 = vector.broadcast %cst_12 : f32 to vector<32x384xf32>
    %32 = arith.maximumf %31, %30 : vector<32x384xf32>
    %33 = vector.broadcast %cst_13 : f32 to vector<32x384xf32>
    %34 = arith.minimumf %33, %32 : vector<32x384xf32>
    %35 = vector.extract_strided_slice %16 {offsets = [64, 0], sizes = [32, 384], strides = [1, 1]} : vector<128x384xf32> to vector<32x384xf32>
    %cst_14 = arith.constant 2.000000e-01 : f32
    %36 = vector.broadcast %cst_14 : f32 to vector<32x384xf32>
    %37 = arith.mulf %36, %35 : vector<32x384xf32>
    %cst_15 = arith.constant 5.000000e-01 : f32
    %38 = vector.broadcast %cst_15 : f32 to vector<32x384xf32>
    %39 = arith.addf %37, %38 : vector<32x384xf32>
    %cst_16 = arith.constant 0.000000e+00 : f32
    %cst_17 = arith.constant 1.000000e+00 : f32
    %40 = vector.broadcast %cst_16 : f32 to vector<32x384xf32>
    %41 = arith.maximumf %40, %39 : vector<32x384xf32>
    %42 = vector.broadcast %cst_17 : f32 to vector<32x384xf32>
    %43 = arith.minimumf %42, %41 : vector<32x384xf32>
    %44 = vector.extract_strided_slice %16 {offsets = [96, 0], sizes = [32, 384], strides = [1, 1]} : vector<128x384xf32> to vector<32x384xf32>
    %45 = math.tanh %44 : vector<32x384xf32>
    %c0_18 = arith.constant 0 : index
    %c0_19 = arith.constant 0 : index
    %c0_20 = arith.constant 0 : index
    %46 = vector.load %arg4[%c0_18, %c0_19, %c0_20] : memref<1x32x384xf32, #tpu.memory_space<vmem>>, vector<1x32x384xf32>
    %47 = vector.shape_cast %46 : vector<1x32x384xf32> to vector<32x384xf32>
    %48 = arith.mulf %34, %47 : vector<32x384xf32>
    %49 = arith.mulf %25, %45 : vector<32x384xf32>
    %50 = arith.addf %48, %49 : vector<32x384xf32>
    %51 = math.tanh %50 : vector<32x384xf32>
    %52 = arith.mulf %43, %51 : vector<32x384xf32>
    %c0_21 = arith.constant 0 : index
    %c0_22 = arith.constant 0 : index
    %c0_23 = arith.constant 0 : index
    %53 = vector.load %arg5[%c0_21, %c0_22, %c0_23] : memref<1x32x384xf32, #tpu.memory_space<vmem>>, vector<1x32x384xf32>
    %54 = vector.shape_cast %53 : vector<1x32x384xf32> to vector<32x384xf32>
    %55 = vector.shape_cast %52 : vector<32x384xf32> to vector<1x32x384xf32>
    tpu.vector_store %arg5[%c0_21, %c0_22, %c0_23], %55 {strides = array<i32>} : memref<1x32x384xf32, #tpu.memory_space<vmem>>, vector<1x32x384xf32>,
    %c0_24 = arith.constant 0 : index
    %c0_25 = arith.constant 0 : index
    %c0_26 = arith.constant 0 : index
    %56 = vector.load %arg6[%c0_24, %c0_25, %c0_26] : memref<1x32x384xf32, #tpu.memory_space<vmem>>, vector<1x32x384xf32>
    %57 = vector.shape_cast %56 : vector<1x32x384xf32> to vector<32x384xf32>
    %58 = vector.shape_cast %50 : vector<32x384xf32> to vector<1x32x384xf32>
    tpu.vector_store %arg6[%c0_24, %c0_25, %c0_26], %58 {strides = array<i32>} : memref<1x32x384xf32, #tpu.memory_space<vmem>>, vector<1x32x384xf32>,
    return
  }
  func.func @transform_0(%arg0: i32) -> (i32, i32, i32) {
    %c0_i32 = arith.constant 0 : i32
    %c0_i32_0 = arith.constant 0 : i32
    %c0_i32_1 = arith.constant 0 : i32
    return %arg0, %c0_i32, %c0_i32_0 : i32, i32, i32
  }
  func.func @transform_1(%arg0: i32) -> (i32, i32) {
    %c0_i32 = arith.constant 0 : i32
    %c0_i32_0 = arith.constant 0 : i32
    %c0_i32_1 = arith.constant 0 : i32
    return %c0_i32, %c0_i32_0 : i32, i32
  }
  func.func @transform_2(%arg0: i32) -> (i32, i32) {
    %c0_i32 = arith.constant 0 : i32
    %c0_i32_0 = arith.constant 0 : i32
    %c0_i32_1 = arith.constant 0 : i32
    return %c0_i32, %c0_i32_0 : i32, i32
  }
  func.func @transform_3(%arg0: i32) -> (i32, i32, i32) {
    %c0_i32 = arith.constant 0 : i32
    %c0_i32_0 = arith.constant 0 : i32
    %c0_i32_1 = arith.constant 0 : i32
    return %arg0, %c0_i32, %c0_i32_0 : i32, i32, i32
  }
  func.func @transform_4(%arg0: i32) -> (i32, i32, i32) {
    %c0_i32 = arith.constant 0 : i32
    %c0_i32_0 = arith.constant 0 : i32
    %c0_i32_1 = arith.constant 0 : i32
    return %arg0, %c0_i32, %c0_i32_0 : i32, i32, i32
  }
  func.func @transform_5(%arg0: i32) -> (i32, i32, i32) {
    %c0_i32 = arith.constant 0 : i32
    %c0_i32_0 = arith.constant 0 : i32
    %c0_i32_1 = arith.constant 0 : i32
    return %arg0, %c0_i32, %c0_i32_0 : i32, i32, i32
  }
}

</mosaic_0001>

<llo_original>
// kernel: tpu_custom_call.1
$region0: #{tpu_custom_call.1}
  #allocation0 [shape = 'u32[]', space=smem, size = 0x4, offset = 0x4, fixed_abs, tag = 'smem constant byte address 0x4 - core index']
  #allocation1 [shape = 'u32[72,128]{1,0:T(1,128)}', space=vmem, size = 0x9000, scoped, tag = 'internal scratch']
  %s0 = inlined_call_operand.vmem [shape: bf16[2,36,512], index: 0, kind: input, shape index: {}]
  %s1 = inlined_call_operand.vmem [shape: bf16[128,324], index: 1, kind: input, shape index: {}]
  %s2 = inlined_call_operand.vmem [shape: f32[128,1], index: 2, kind: input, shape index: {}]
  %s3 = inlined_call_operand.vmem [shape: f32[2,32,384], index: 3, kind: input, shape index: {}]
  %s4 = inlined_call_operand.hbm [shape: f32[2,32,384], index: 4, kind: output, shape index: {0}]
  %s5 = inlined_call_operand.hbm [shape: f32[2,32,384], index: 5, kind: output, shape index: {1}]
  %6 = xla_tuple %s4, %s5
  %s7 = sld [smem:[#allocation0]]
  $region57: #{tpu_custom_call.1} parent=0
    _
  %s9 = ssub.s32 1, %s7
  %s10 = scalar_select 0, %s9, %s7
  $region1: #{tpu_custom_call.1} parent=0
    #allocation2 [shape = 'u8[98304]{0}', space=vmem, size = 0x18000, scoped, tag = 'output window, operand 0']
    #allocation3 [shape = 's32[2]{0}', space=sflag, size = 0x8, scoped, tag = 'scoped memory for tpu_custom_call.1']
    #allocation4 [shape = 'u8[98304]{0}', space=vmem, size = 0x18000, scoped, tag = 'output window, operand 1']
    #allocation5 [shape = 's32[2]{0}', space=sflag, size = 0x8, scoped, tag = 'scoped memory for tpu_custom_call.1']
    %11 = vsyncpa [#allocation3], 0
    %s12 = scalar_lea.sflag [#allocation3], 1
    %13 = vsyncpa %s12, 0
    %14 = vsyncpa [#allocation5], 0
    %s15 = scalar_lea.sflag [#allocation5], 1
    %16 = vsyncpa %s15, 0
    loop: start=0, step=1, limit=4
    $region2: #{tpu_custom_call.1} parent=1 // loop_pre_header
      _
    $region3: #{tpu_custom_call.1} parent=1 // loop_header
      %s18 = sphi 0, %s22
      %p19 = scmp.ge.s32.totalorder %s18, 4
      %s28 = sphi 0, %s30
      %s31 = sphi 0, %s28
      %s32 = sphi 0, %s31
      %s48 = sphi 0, %s32
      %s52 = sphi 0, %s52
      %s54 = sphi 0, %s52
      %s55 = sphi 0, %s54
      %s69 = sphi 0, %s55
      %s73 = sphi 0, %s73
      %s75 = sphi 0, %s73
      %s76 = sphi 0, %s75
      %s90 = sphi 0, %s76
      %s96 = sphi 0, %s98
      %s99 = sphi 0, %s96
      %s100 = sphi 0, %s99
      %s116 = sphi 0, %s100
      %s122 = sphi 0, %s124
      %s125 = sphi 0, %s122
      %s126 = sphi 0, %s125
      %s142 = sphi 0, %s126
      %s148 = sphi 0, %s150
      %s151 = sphi 0, %s148
      %s152 = sphi 0, %s151
      %s168 = sphi 0, %s152
    $region4: #{tpu_custom_call.1} parent=1 // loop_header_branch
      %21 = sbr.rel (%p19) target = $region8
    $region5: #{tpu_custom_call.1} parent=1 // loop_body
      %s23 = ssub.s32 %s18, 1
      %s24 = ssub.s32 %s18, 2
      %s25 = sadd.s32 %s18, 1
      %s26 = ssub.s32 %s18, %s25
      %p27 = scmp.eq.s32.totalorder %s26, 0
      %s29 = sadd.s32 %s28, 1
      %s30 = scalar_select %p27, %s28, %s29
      %p33 = pneg %p27
      %p34 = scmp.eq.s32.totalorder %s18, 1
      %p35 = por %p33, %p34
      %p36 = scmp.ne.s32.totalorder %s28, %s31
      %p37 = scmp.eq.s32.totalorder %s18, 0
      %p38 = por %p36, %p37
      %p39 = scmp.ne.s32.totalorder %s28, %s31
      %p40 = scmp.eq.s32.totalorder %s23, 1
      %p41 = por %p39, %p40
      %p42 = scmp.ne.s32.totalorder %s31, %s32
      %p43 = scmp.eq.s32.totalorder %s23, 0
      %p44 = por %p42, %p43
      %p45 = scmp.ne.s32.totalorder %s31, %s32
      %p46 = scmp.eq.s32.totalorder %s24, 1
      %p47 = por %p45, %p46
      %p49 = scmp.ne.s32.totalorder %s32, %s48
      %p50 = scmp.eq.s32.totalorder %s24, 0
      %p51 = por %p49, %p50
      %s53 = sadd.s32 %s52, 1
      %p56 = scmp.eq.s32.totalorder %s18, 1
      %p57 = scmp.ne.s32.totalorder %s52, %s54
      %p58 = scmp.eq.s32.totalorder %s18, 0
      %p59 = por %p57, %p58
      %p60 = scmp.ne.s32.totalorder %s52, %s54
      %p61 = scmp.eq.s32.totalorder %s23, 1
      %p62 = por %p60, %p61
      %p63 = scmp.ne.s32.totalorder %s54, %s55
      %p64 = scmp.eq.s32.totalorder %s23, 0
      %p65 = por %p63, %p64
      %p66 = scmp.ne.s32.totalorder %s54, %s55
      %p67 = scmp.eq.s32.totalorder %s24, 1
      %p68 = por %p66, %p67
      %p70 = scmp.ne.s32.totalorder %s55, %s69
      %p71 = scmp.eq.s32.totalorder %s24, 0
      %p72 = por %p70, %p71
      %s74 = sadd.s32 %s73, 1
      %p77 = scmp.eq.s32.totalorder %s18, 1
      %p78 = scmp.ne.s32.totalorder %s73, %s75
      %p79 = scmp.eq.s32.totalorder %s18, 0
      %p80 = por %p78, %p79
      %p81 = scmp.ne.s32.totalorder %s73, %s75
      %p82 = scmp.eq.s32.totalorder %s23, 1
      %p83 = por %p81, %p82
      %p84 = scmp.ne.s32.totalorder %s75, %s76
      %p85 = scmp.eq.s32.totalorder %s23, 0
      %p86 = por %p84, %p85
      %p87 = scmp.ne.s32.totalorder %s75, %s76
      %p88 = scmp.eq.s32.totalorder %s24, 1
      %p89 = por %p87, %p88
      %p91 = scmp.ne.s32.totalorder %s76, %s90
      %p92 = scmp.eq.s32.totalorder %s24, 0
      %p93 = por %p91, %p92
      %s94 = ssub.s32 %s18, %s25
      %p95 = scmp.eq.s32.totalorder %s94, 0
      %s97 = sadd.s32 %s96, 1
      %s98 = scalar_select %p95, %s96, %s97
      %p101 = pneg %p95
      %p102 = scmp.eq.s32.totalorder %s18, 1
      %p103 = por %p101, %p102
      %p104 = scmp.ne.s32.totalorder %s96, %s99
      %p105 = scmp.eq.s32.totalorder %s18, 0
      %p106 = por %p104, %p105
      %p107 = scmp.ne.s32.totalorder %s96, %s99
      %p108 = scmp.eq.s32.totalorder %s23, 1
      %p109 = por %p107, %p108
      %p110 = scmp.ne.s32.totalorder %s99, %s100
      %p111 = scmp.eq.s32.totalorder %s23, 0
      %p112 = por %p110, %p111
      %p113 = scmp.ne.s32.totalorder %s99, %s100
      %p114 = scmp.eq.s32.totalorder %s24, 1
      %p115 = por %p113, %p114
      %p117 = scmp.ne.s32.totalorder %s100, %s116
      %p118 = scmp.eq.s32.totalorder %s24, 0
      %p119 = por %p117, %p118
      %s120 = ssub.s32 %s18, %s25
      %p121 = scmp.eq.s32.totalorder %s120, 0
      %s123 = sadd.s32 %s122, 1
      %s124 = scalar_select %p121, %s122, %s123
      %p127 = pneg %p121
      %p128 = scmp.eq.s32.totalorder %s18, 1
      %p129 = por %p127, %p128
      %p130 = scmp.ne.s32.totalorder %s122, %s125
      %p131 = scmp.eq.s32.totalorder %s18, 0
      %p132 = por %p130, %p131
      %p133 = scmp.ne.s32.totalorder %s122, %s125
      %p134 = scmp.eq.s32.totalorder %s23, 1
      %p135 = por %p133, %p134
      %p136 = scmp.ne.s32.totalorder %s125, %s126
      %p137 = scmp.eq.s32.totalorder %s23, 0
      %p138 = por %p136, %p137
      %p139 = scmp.ne.s32.totalorder %s125, %s126
      %p140 = scmp.eq.s32.totalorder %s24, 1
      %p141 = por %p139, %p140
      %p143 = scmp.ne.s32.totalorder %s126, %s142
      %p144 = scmp.eq.s32.totalorder %s24, 0
      %p145 = por %p143, %p144
      %s146 = ssub.s32 %s18, %s25
      %p147 = scmp.eq.s32.totalorder %s146, 0
      %s149 = sadd.s32 %s148, 1
      %s150 = scalar_select %p147, %s148, %s149
      %p153 = pneg %p147
      %p154 = scmp.eq.s32.totalorder %s18, 1
      %p155 = por %p153, %p154
      %p156 = scmp.ne.s32.totalorder %s148, %s151
      %p157 = scmp.eq.s32.totalorder %s18, 0
      %p158 = por %p156, %p157
      %p159 = scmp.ne.s32.totalorder %s148, %s151
      %p160 = scmp.eq.s32.totalorder %s23, 1
      %p161 = por %p159, %p160
      %p162 = scmp.ne.s32.totalorder %s151, %s152
      %p163 = scmp.eq.s32.totalorder %s23, 0
      %p164 = por %p162, %p163
      %p165 = scmp.ne.s32.totalorder %s151, %s152
      %p166 = scmp.eq.s32.totalorder %s24, 1
      %p167 = por %p165, %p166
      %p169 = scmp.ne.s32.totalorder %s152, %s168
      %p170 = scmp.eq.s32.totalorder %s24, 0
      %p171 = por %p169, %p170
      %p172 = scmp.le.s32.totalorder 1, %s18
      %p173 = scmp.lt.s32.totalorder %s18, 3
      %p174 = pnand %p172, %p173
      %p175 = pneg %p174
      // Predicated region
      $region9: #{tpu_custom_call.1} parent=5 // pred_check
        _
      $region10: #{tpu_custom_call.1} parent=5 // pred_check_branch
        %177 = sbr.rel (%p174) target = $region12
      $region11: #{tpu_custom_call.1} parent=5 // pred_region
        %s178 = ssub.s32 %s18, 1
        // Predicated region
        $region13: #{tpu_custom_call.1} parent=11 // pred_check
          %p179 = pneg %p65
        $region14: #{tpu_custom_call.1} parent=11 // pred_check_branch
          %181 = sbr.rel (%p179) target = $region16
        $region15: #{tpu_custom_call.1} parent=11 // pred_region
          _
        $region16: #{tpu_custom_call.1} parent=11 // pred_fallthru
          _
        // Predicated region
        $region17: #{tpu_custom_call.1} parent=11 // pred_check
          %p182 = pneg %p86
        $region18: #{tpu_custom_call.1} parent=11 // pred_check_branch
          %184 = sbr.rel (%p182) target = $region20
        $region19: #{tpu_custom_call.1} parent=11 // pred_region
          _
        $region20: #{tpu_custom_call.1} parent=11 // pred_fallthru
          _
      $region12: #{tpu_custom_call.1} parent=5 // pred_fallthru
        _
      %p185 = scmp.lt.s32.totalorder %s18, 2
      // Predicated region
      $region21: #{tpu_custom_call.1} parent=5 // pred_check
        %p186 = pneg %p185
      $region22: #{tpu_custom_call.1} parent=5 // pred_check_branch
        %188 = sbr.rel (%p186) target = $region24
      $region23: #{tpu_custom_call.1} parent=5 // pred_region
        // Predicated region
        $region25: #{tpu_custom_call.1} parent=23 // pred_check
          %p189 = pneg %p38
        $region26: #{tpu_custom_call.1} parent=23 // pred_check_branch
          %191 = sbr.rel (%p189) target = $region28
        $region27: #{tpu_custom_call.1} parent=23 // pred_region
          %p192 = scmp.lt.s32.totalorder %s18, 1
          %s193 = scalar_select %p192, %s18, 1
          %s194 = smul.addr %s193, 20
          %s195 = smul.addr %s194, 4
          %s196 = scalar_lea.vmem %s0, %s195
        $region28: #{tpu_custom_call.1} parent=23 // pred_fallthru
          _
        // Predicated region
        $region29: #{tpu_custom_call.1} parent=23 // pred_check
          %p197 = pneg %p106
        $region30: #{tpu_custom_call.1} parent=23 // pred_check_branch
          %199 = sbr.rel (%p197) target = $region32
        $region31: #{tpu_custom_call.1} parent=23 // pred_region
          %p200 = scmp.lt.s32.totalorder %s18, 1
          %s201 = scalar_select %p200, %s18, 1
          %s202 = smul.addr %s201, 12
          %s203 = smul.addr %s202, 8
          %s204 = scalar_lea.vmem %s3, %s203
        $region32: #{tpu_custom_call.1} parent=23 // pred_fallthru
          _
      $region24: #{tpu_custom_call.1} parent=5 // pred_fallthru
        _
      %p205 = scmp.le.s32.totalorder 1, %s18
      %p206 = scmp.lt.s32.totalorder %s18, 3
      %p207 = pnand %p205, %p206
      %p208 = pneg %p207
      // Predicated region
      $region33: #{tpu_custom_call.1} parent=5 // pred_check
        _
      $region34: #{tpu_custom_call.1} parent=5 // pred_check_branch
        %210 = sbr.rel (%p207) target = $region36
      $region35: #{tpu_custom_call.1} parent=5 // pred_region
        %s211 = ssub.s32 %s18, 1
        %p212 = scmp.lt.s32.totalorder %s23, 1
        %s213 = scalar_select %p212, %s23, 1
        %s214 = smul.addr %s213, 20
        %s215 = smul.addr %s214, 4
        %s216 = scalar_lea.vmem %s0, %s215
        %p217 = pneg %p44
        %p218 = pneg %p41
        %p219 = pneg %p65
        %p220 = pneg %p62
        %p221 = pneg %p86
        %p222 = pneg %p83
        %p223 = scmp.lt.s32.totalorder %s23, 1
        %s224 = scalar_select %p223, %s23, 1
        %s225 = smul.addr %s224, 12
        %s226 = smul.addr %s225, 8
        %s227 = scalar_lea.vmem %s3, %s226
        %p228 = pneg %p112
        %p229 = pneg %p109
        %p230 = pneg %p138
        %p231 = pneg %p135
        %s232 = sand.u32 %s125, 1
        %s233 = scalar_lea.sflag [#allocation3], %s232
        %s234 = sand.u32 %s125, 1
        %s235 = smul.addr %s234, 96
        %s236 = scalar_lea.vmem [#allocation2], %s235
        %p237 = pneg %p164
        %p238 = pneg %p161
        %s239 = sand.u32 %s151, 1
        %s240 = scalar_lea.sflag [#allocation5], %s239
        %s241 = sand.u32 %s151, 1
        %s242 = smul.addr %s241, 96
        %s243 = scalar_lea.vmem [#allocation4], %s242
        %p244 = scmp.lt.s32.totalorder %s23, 1
        %s245 = scalar_select %p244, %s23, 1
        %s246 = smul.addr %s245, 20
        %s247 = smul.addr %s246, 4
        %s248 = scalar_lea.vmem %s0, %s247
        %p249 = scmp.lt.s32.totalorder %s23, 1
        %s250 = scalar_select %p249, %s23, 1
        %s251 = smul.addr %s250, 12
        %s252 = smul.addr %s251, 8
        %s253 = scalar_lea.vmem %s3, %s252
        %v255 = vld [vmem:[%s248] sm:$0xff]
        %v256 = vld [vmem:[%s248 + $0x8] sm:$0xff]
        %v257 = vld [vmem:[%s248 + $0x10] sm:$0xff]
        %v258 = vld [vmem:[%s248 + $0x18] sm:$0xff]
        %v259 = vld [vmem:[%s248 + $0x20] sm:$0xff]
        %v260 = vld [vmem:[%s248 + $0x28] sm:$0xff]
        %v261 = vld [vmem:[%s248 + $0x30] sm:$0xff]
        %v262 = vld [vmem:[%s248 + $0x38] sm:$0xff]
        %v263 = vld [vmem:[%s248 + $0x40] sm:$0x33]
        %v264 = vld [vmem:[%s248 + $0x48] sm:$0x33]
        %v275 = vunpack.c.l.b16 %v255
        %v276 = vunpack.c.h.b16 %v255
        %v277 = vunpack.c.l.b16 %v256
        %v278 = vunpack.c.l.b16 %v257
        %v279 = vunpack.c.h.b16 %v257
        %v280 = vunpack.c.l.b16 %v258
        %v281 = vunpack.c.l.b16 %v259
        %v282 = vunpack.c.h.b16 %v259
        %v283 = vunpack.c.l.b16 %v260
        %v284 = vunpack.c.l.b16 %v261
        %v285 = vunpack.c.h.b16 %v261
        %v286 = vunpack.c.l.b16 %v262
        %v287 = vunpack.c.l.b16 %v263
        %v288 = vunpack.c.h.b16 %v263
        %v289 = vunpack.c.l.b16 %v264
        %v290 = vpack.c.b16 %v278, %v275
        %v291 = vpack.c.b16 %v279, %v276
        %v292 = vpack.c.b16 %v280, %v277
        %v293 = vpack.c.b16 %v284, %v281
        %v294 = vpack.c.b16 %v285, %v282
        %v295 = vpack.c.b16 %v286, %v283
        %v296 = vpack.c.b16 %v287, %v287
        %v297 = vpack.c.b16 %v288, %v288
        %v298 = vpack.c.b16 %v289, %v289
        %v305 = vunpack.c.h.b16 %v256
        %v306 = vunpack.c.h.b16 %v258
        %v307 = vunpack.c.h.b16 %v260
        %v308 = vunpack.c.h.b16 %v262
        %v309 = vunpack.c.h.b16 %v264
        %v310 = vpack.c.b16 %v306, %v305
        %v311 = vpack.c.b16 %v308, %v307
        %v312 = vpack.c.b16 %v309, %v309
        %vm313 = vcmask 1041408
        %v314 = vrot.slane %v290, 6
        %v315 = vrot.slane %v291, 6
        %v316 = vrot.slane %v292, 6
        %v317 = vrot.slane %v310, 6
        %v318 = vrot.slane %v293, 6
        %v319 = vsel %vm313, %v314, %v318
        %v320 = vrot.slane %v294, 6
        %v321 = vsel %vm313, %v315, %v320
        %v322 = vrot.slane %v295, 6
        %v323 = vsel %vm313, %v316, %v322
        %v324 = vrot.slane %v311, 6
        %v325 = vsel %vm313, %v317, %v324
        %v326 = vrot.slane %v296, 6
        %v327 = vsel %vm313, %v318, %v326
        %v328 = vrot.slane %v297, 6
        %v329 = vsel %vm313, %v320, %v328
        %v330 = vrot.slane %v298, 6
        %v331 = vsel %vm313, %v322, %v330
        %v332 = vrot.slane %v312, 6
        %v333 = vsel %vm313, %v324, %v332
        %334 = vrot.lane.b32.xlu0 %v314, 127
        %v335 = vpop.permute.xlu0 %334
        %336 = vrot.lane.b32.xlu0 %v315, 127
        %v337 = vpop.permute.xlu0 %336
        %338 = vrot.lane.b32.xlu0 %v316, 127
        %v339 = vpop.permute.xlu0 %338
        %340 = vrot.lane.b32.xlu0 %v317, 127
        %v341 = vpop.permute.xlu0 %340
        %342 = vrot.lane.b32.xlu0 %v319, 127
        %v343 = vpop.permute.xlu0 %342
        %344 = vrot.lane.b32.xlu0 %v321, 127
        %v345 = vpop.permute.xlu0 %344
        %346 = vrot.lane.b32.xlu0 %v323, 127
        %v347 = vpop.permute.xlu0 %346
        %348 = vrot.lane.b32.xlu0 %v325, 127
        %v349 = vpop.permute.xlu0 %348
        %350 = vrot.lane.b32.xlu0 %v327, 127
        %v351 = vpop.permute.xlu0 %350
        %352 = vrot.lane.b32.xlu0 %v329, 127
        %v353 = vpop.permute.xlu0 %352
        %354 = vrot.lane.b32.xlu0 %v331, 127
        %v355 = vpop.permute.xlu0 %354
        %356 = vrot.lane.b32.xlu0 %v333, 127
        %v357 = vpop.permute.xlu0 %356
        %vm358 = vcmask 1039360
        %v359 = vsel %vm358, %v335, %v337
        %v360 = vsel %vm358, %v337, %v339
        %v361 = vsel %vm358, %v339, %v341
        %v362 = vsel %vm358, %v343, %v345
        %v363 = vsel %vm358, %v345, %v347
        %v364 = vsel %vm358, %v347, %v349
        %v365 = vsel %vm358, %v351, %v353
        %v366 = vsel %vm358, %v353, %v355
        %v367 = vsel %vm358, %v355, %v357
        %v371 = vpack.c.b16 %v275, %v275
        %v372 = vpack.c.b16 %v276, %v276
        %v373 = vpack.c.b16 %v277, %v277
        %v374 = vpack.c.b16 %v305, %v305
        %v375 = vpack.c.b16 %v281, %v278
        %v376 = vpack.c.b16 %v282, %v279
        %v377 = vpack.c.b16 %v283, %v280
        %v378 = vpack.c.b16 %v307, %v306
        %v379 = vpack.c.b16 %v287, %v284
        %v380 = vpack.c.b16 %v288, %v285
        %v381 = vpack.c.b16 %v289, %v286
        %v382 = vpack.c.b16 %v309, %v308
        %383 = vrot.lane.b32.xlu0 %v371, 126
        %v384 = vpop.permute.xlu0 %383
        %385 = vrot.lane.b32.xlu0 %v372, 126
        %v386 = vpop.permute.xlu0 %385
        %387 = vrot.lane.b32.xlu0 %v373, 126
        %v388 = vpop.permute.xlu0 %387
        %389 = vrot.lane.b32.xlu0 %v374, 126
        %v390 = vpop.permute.xlu0 %389
        %391 = vrot.lane.b32.xlu0 %v375, 126
        %v392 = vpop.permute.xlu0 %391
        %393 = vrot.lane.b32.xlu0 %v376, 126
        %v394 = vpop.permute.xlu0 %393
        %395 = vrot.lane.b32.xlu0 %v377, 126
        %v396 = vpop.permute.xlu0 %395
        %397 = vrot.lane.b32.xlu0 %v378, 126
        %v398 = vpop.permute.xlu0 %397
        %399 = vrot.lane.b32.xlu0 %v379, 126
        %v400 = vpop.permute.xlu0 %399
        %401 = vrot.lane.b32.xlu0 %v380, 126
        %v402 = vpop.permute.xlu0 %401
        %403 = vrot.lane.b32.xlu0 %v381, 126
        %v404 = vpop.permute.xlu0 %403
        %405 = vrot.lane.b32.xlu0 %v382, 126
        %v406 = vpop.permute.xlu0 %405
        %vm407 = vcmask 1031168
        %v408 = vsel %vm407, %v384, %v386
        %v409 = vsel %vm407, %v386, %v388
        %v410 = vsel %vm407, %v388, %v390
        %v411 = vsel %vm407, %v392, %v394
        %v412 = vsel %vm407, %v394, %v396
        %v413 = vsel %vm407, %v396, %v398
        %v414 = vsel %vm407, %v400, %v402
        %v415 = vsel %vm407, %v402, %v404
        %v416 = vsel %vm407, %v404, %v406
        %vm420 = vcmask 1045504
        %v421 = vrot.slane %v290, 2
        %v422 = vrot.slane %v291, 2
        %v423 = vrot.slane %v292, 2
        %v424 = vrot.slane %v310, 2
        %v425 = vrot.slane %v293, 2
        %v426 = vsel %vm420, %v421, %v425
        %v427 = vrot.slane %v294, 2
        %v428 = vsel %vm420, %v422, %v427
        %v429 = vrot.slane %v295, 2
        %v430 = vsel %vm420, %v423, %v429
        %v431 = vrot.slane %v311, 2
        %v432 = vsel %vm420, %v424, %v431
        %v433 = vrot.slane %v296, 2
        %v434 = vsel %vm420, %v425, %v433
        %v435 = vrot.slane %v297, 2
        %v436 = vsel %vm420, %v427, %v435
        %v437 = vrot.slane %v298, 2
        %v438 = vsel %vm420, %v429, %v437
        %v439 = vrot.slane %v312, 2
        %v440 = vsel %vm420, %v431, %v439
        %441 = vrot.lane.b32.xlu0 %v421, 110
        %v442 = vpop.permute.xlu0 %441
        %443 = vrot.lane.b32.xlu0 %v422, 110
        %v444 = vpop.permute.xlu0 %443
        %445 = vrot.lane.b32.xlu0 %v423, 110
        %v446 = vpop.permute.xlu0 %445
        %447 = vrot.lane.b32.xlu0 %v424, 110
        %v448 = vpop.permute.xlu0 %447
        %449 = vrot.lane.b32.xlu0 %v426, 110
        %v450 = vpop.permute.xlu0 %449
        %451 = vrot.lane.b32.xlu0 %v428, 110
        %v452 = vpop.permute.xlu0 %451
        %453 = vrot.lane.b32.xlu0 %v430, 110
        %v454 = vpop.permute.xlu0 %453
        %455 = vrot.lane.b32.xlu0 %v432, 110
        %v456 = vpop.permute.xlu0 %455
        %457 = vrot.lane.b32.xlu0 %v434, 110
        %v458 = vpop.permute.xlu0 %457
        %459 = vrot.lane.b32.xlu0 %v436, 110
        %v460 = vpop.permute.xlu0 %459
        %461 = vrot.lane.b32.xlu0 %v438, 110
        %v462 = vpop.permute.xlu0 %461
        %463 = vrot.lane.b32.xlu0 %v440, 110
        %v464 = vpop.permute.xlu0 %463
        %vm465 = vcmask 900096
        %v466 = vsel %vm465, %v442, %v444
        %v467 = vsel %vm465, %v444, %v446
        %v468 = vsel %vm465, %v446, %v448
        %v469 = vsel %vm465, %v450, %v452
        %v470 = vsel %vm465, %v452, %v454
        %v471 = vsel %vm465, %v454, %v456
        %v472 = vsel %vm465, %v458, %v460
        %v473 = vsel %vm465, %v460, %v462
        %v474 = vsel %vm465, %v462, %v464
        %481 = vrot.lane.b32.xlu0 %v290, 109
        %v482 = vpop.permute.xlu0 %481
        %483 = vrot.lane.b32.xlu0 %v291, 109
        %v484 = vpop.permute.xlu0 %483
        %485 = vrot.lane.b32.xlu0 %v292, 109
        %v486 = vpop.permute.xlu0 %485
        %487 = vrot.lane.b32.xlu0 %v310, 109
        %v488 = vpop.permute.xlu0 %487
        %489 = vrot.lane.b32.xlu0 %v293, 109
        %v490 = vpop.permute.xlu0 %489
        %491 = vrot.lane.b32.xlu0 %v294, 109
        %v492 = vpop.permute.xlu0 %491
        %493 = vrot.lane.b32.xlu0 %v295, 109
        %v494 = vpop.permute.xlu0 %493
        %495 = vrot.lane.b32.xlu0 %v311, 109
        %v496 = vpop.permute.xlu0 %495
        %497 = vrot.lane.b32.xlu0 %v296, 109
        %v498 = vpop.permute.xlu0 %497
        %499 = vrot.lane.b32.xlu0 %v297, 109
        %v500 = vpop.permute.xlu0 %499
        %501 = vrot.lane.b32.xlu0 %v298, 109
        %v502 = vpop.permute.xlu0 %501
        %503 = vrot.lane.b32.xlu0 %v312, 109
        %v504 = vpop.permute.xlu0 %503
        %vm505 = vcmask 891904
        %v506 = vsel %vm505, %v482, %v484
        %v507 = vsel %vm505, %v484, %v486
        %v508 = vsel %vm505, %v486, %v488
        %v509 = vsel %vm505, %v490, %v492
        %v510 = vsel %vm505, %v492, %v494
        %v511 = vsel %vm505, %v494, %v496
        %v512 = vsel %vm505, %v498, %v500
        %v513 = vsel %vm505, %v500, %v502
        %v514 = vsel %vm505, %v502, %v504
        %521 = vrot.lane.b32.xlu0 %v314, 108
        %v522 = vpop.permute.xlu0 %521
        %523 = vrot.lane.b32.xlu0 %v315, 108
        %v524 = vpop.permute.xlu0 %523
        %525 = vrot.lane.b32.xlu0 %v316, 108
        %v526 = vpop.permute.xlu0 %525
        %527 = vrot.lane.b32.xlu0 %v317, 108
        %v528 = vpop.permute.xlu0 %527
        %529 = vrot.lane.b32.xlu0 %v319, 108
        %v530 = vpop.permute.xlu0 %529
        %531 = vrot.lane.b32.xlu0 %v321, 108
        %v532 = vpop.permute.xlu0 %531
        %533 = vrot.lane.b32.xlu0 %v323, 108
        %v534 = vpop.permute.xlu0 %533
        %535 = vrot.lane.b32.xlu0 %v325, 108
        %v536 = vpop.permute.xlu0 %535
        %537 = vrot.lane.b32.xlu0 %v327, 108
        %v538 = vpop.permute.xlu0 %537
        %539 = vrot.lane.b32.xlu0 %v329, 108
        %v540 = vpop.permute.xlu0 %539
        %541 = vrot.lane.b32.xlu0 %v331, 108
        %v542 = vpop.permute.xlu0 %541
        %543 = vrot.lane.b32.xlu0 %v333, 108
        %v544 = vpop.permute.xlu0 %543
        %vm545 = vcmask 883712
        %v546 = vsel %vm545, %v522, %v524
        %v547 = vsel %vm545, %v524, %v526
        %v548 = vsel %vm545, %v526, %v528
        %v549 = vsel %vm545, %v530, %v532
        %v550 = vsel %vm545, %v532, %v534
        %v551 = vsel %vm545, %v534, %v536
        %v552 = vsel %vm545, %v538, %v540
        %v553 = vsel %vm545, %v540, %v542
        %v554 = vsel %vm545, %v542, %v544
        %558 = vrot.lane.b32.xlu0 %v371, 92
        %v559 = vpop.permute.xlu0 %558
        %560 = vrot.lane.b32.xlu0 %v372, 92
        %v561 = vpop.permute.xlu0 %560
        %562 = vrot.lane.b32.xlu0 %v373, 92
        %v563 = vpop.permute.xlu0 %562
        %564 = vrot.lane.b32.xlu0 %v374, 92
        %v565 = vpop.permute.xlu0 %564
        %566 = vrot.lane.b32.xlu0 %v375, 92
        %v567 = vpop.permute.xlu0 %566
        %568 = vrot.lane.b32.xlu0 %v376, 92
        %v569 = vpop.permute.xlu0 %568
        %570 = vrot.lane.b32.xlu0 %v377, 92
        %v571 = vpop.permute.xlu0 %570
        %572 = vrot.lane.b32.xlu0 %v378, 92
        %v573 = vpop.permute.xlu0 %572
        %574 = vrot.lane.b32.xlu0 %v379, 92
        %v575 = vpop.permute.xlu0 %574
        %576 = vrot.lane.b32.xlu0 %v380, 92
        %v577 = vpop.permute.xlu0 %576
        %578 = vrot.lane.b32.xlu0 %v381, 92
        %v579 = vpop.permute.xlu0 %578
        %580 = vrot.lane.b32.xlu0 %v382, 92
        %v581 = vpop.permute.xlu0 %580
        %vm582 = vcmask 752640
        %v583 = vsel %vm582, %v559, %v561
        %v584 = vsel %vm582, %v561, %v563
        %v585 = vsel %vm582, %v563, %v565
        %v586 = vsel %vm582, %v567, %v569
        %v587 = vsel %vm582, %v569, %v571
        %v588 = vsel %vm582, %v571, %v573
        %v589 = vsel %vm582, %v575, %v577
        %v590 = vsel %vm582, %v577, %v579
        %v591 = vsel %vm582, %v579, %v581
        %595 = vrot.lane.b32.xlu0 %v421, 91
        %v596 = vpop.permute.xlu0 %595
        %597 = vrot.lane.b32.xlu0 %v422, 91
        %v598 = vpop.permute.xlu0 %597
        %599 = vrot.lane.b32.xlu0 %v423, 91
        %v600 = vpop.permute.xlu0 %599
        %601 = vrot.lane.b32.xlu0 %v424, 91
        %v602 = vpop.permute.xlu0 %601
        %603 = vrot.lane.b32.xlu0 %v426, 91
        %v604 = vpop.permute.xlu0 %603
        %605 = vrot.lane.b32.xlu0 %v428, 91
        %v606 = vpop.permute.xlu0 %605
        %607 = vrot.lane.b32.xlu0 %v430, 91
        %v608 = vpop.permute.xlu0 %607
        %609 = vrot.lane.b32.xlu0 %v432, 91
        %v610 = vpop.permute.xlu0 %609
        %611 = vrot.lane.b32.xlu0 %v434, 91
        %v612 = vpop.permute.xlu0 %611
        %613 = vrot.lane.b32.xlu0 %v436, 91
        %v614 = vpop.permute.xlu0 %613
        %615 = vrot.lane.b32.xlu0 %v438, 91
        %v616 = vpop.permute.xlu0 %615
        %617 = vrot.lane.b32.xlu0 %v440, 91
        %v618 = vpop.permute.xlu0 %617
        %vm619 = vcmask 744448
        %v620 = vsel %vm619, %v596, %v598
        %v621 = vsel %vm619, %v598, %v600
        %v622 = vsel %vm619, %v600, %v602
        %v623 = vsel %vm619, %v604, %v606
        %v624 = vsel %vm619, %v606, %v608
        %v625 = vsel %vm619, %v608, %v610
        %v626 = vsel %vm619, %v612, %v614
        %v627 = vsel %vm619, %v614, %v616
        %v628 = vsel %vm619, %v616, %v618
        %635 = vrot.lane.b32.xlu0 %v290, 90
        %v636 = vpop.permute.xlu0 %635
        %637 = vrot.lane.b32.xlu0 %v291, 90
        %v638 = vpop.permute.xlu0 %637
        %639 = vrot.lane.b32.xlu0 %v292, 90
        %v640 = vpop.permute.xlu0 %639
        %641 = vrot.lane.b32.xlu0 %v310, 90
        %v642 = vpop.permute.xlu0 %641
        %643 = vrot.lane.b32.xlu0 %v293, 90
        %v644 = vpop.permute.xlu0 %643
        %645 = vrot.lane.b32.xlu0 %v294, 90
        %v646 = vpop.permute.xlu0 %645
        %647 = vrot.lane.b32.xlu0 %v295, 90
        %v648 = vpop.permute.xlu0 %647
        %649 = vrot.lane.b32.xlu0 %v311, 90
        %v650 = vpop.permute.xlu0 %649
        %651 = vrot.lane.b32.xlu0 %v296, 90
        %v652 = vpop.permute.xlu0 %651
        %653 = vrot.lane.b32.xlu0 %v297, 90
        %v654 = vpop.permute.xlu0 %653
        %655 = vrot.lane.b32.xlu0 %v298, 90
        %v656 = vpop.permute.xlu0 %655
        %657 = vrot.lane.b32.xlu0 %v312, 90
        %v658 = vpop.permute.xlu0 %657
        %vm659 = vcmask 736256
        %v660 = vsel %vm659, %v636, %v638
        %v661 = vsel %vm659, %v638, %v640
        %v662 = vsel %vm659, %v640, %v642
        %v663 = vsel %vm659, %v644, %v646
        %v664 = vsel %vm659, %v646, %v648
        %v665 = vsel %vm659, %v648, %v650
        %v666 = vsel %vm659, %v652, %v654
        %v667 = vsel %vm659, %v654, %v656
        %v668 = vsel %vm659, %v656, %v658
        %vm675 = vcmask 1041408
        %v678 = vsel %vm675, %v296, %v359
        %v682 = vsel %vm675, %v297, %v360
        %v686 = vsel %vm675, %v298, %v361
        %vm688 = vcmask 1043456
        %v691 = vsel %vm688, %v365, %v408
        %v695 = vsel %vm688, %v366, %v409
        %v699 = vsel %vm688, %v367, %v410
        %vm701 = vcmask 1045504
        %v704 = vsel %vm701, %v414, %v466
        %v708 = vsel %vm701, %v415, %v467
        %v712 = vsel %vm701, %v416, %v468
        %v716 = vsel %vm675, %v512, %v546
        %v720 = vsel %vm675, %v513, %v547
        %v724 = vsel %vm675, %v514, %v548
        %v728 = vsel %vm688, %v552, %v583
        %v732 = vsel %vm688, %v553, %v584
        %v736 = vsel %vm688, %v554, %v585
        %v740 = vsel %vm701, %v589, %v620
        %v744 = vsel %vm701, %v590, %v621
        %v748 = vsel %vm701, %v591, %v622
        %v750 = vld [vmem:[%s1] sm:$0xff]
        %v751 = vld [vmem:[%s1 + $0x8] sm:$0xf]
        %v752 = vld [vmem:[%s1 + $0xc] sm:$0xff]
        %v753 = vld [vmem:[%s1 + $0x14] sm:$0xf]
        %v754 = vld [vmem:[%s1 + $0x18] sm:$0xff]
        %v755 = vld [vmem:[%s1 + $0x20] sm:$0xf]
        %v756 = vld [vmem:[%s1 + $0x24] sm:$0xff]
        %v757 = vld [vmem:[%s1 + $0x2c] sm:$0xf]
        %v758 = vld [vmem:[%s1 + $0x30] sm:$0xff]
        %v759 = vld [vmem:[%s1 + $0x38] sm:$0xf]
        %v760 = vld [vmem:[%s1 + $0x3c] sm:$0xff]
        %v761 = vld [vmem:[%s1 + $0x44] sm:$0xf]
        %v762 = vld [vmem:[%s1 + $0x48] sm:$0xff]
        %v763 = vld [vmem:[%s1 + $0x50] sm:$0xf]
        %v764 = vld [vmem:[%s1 + $0x54] sm:$0xff]
        %v765 = vld [vmem:[%s1 + $0x5c] sm:$0xf]
        %v766 = vld [vmem:[%s1 + $0x60] sm:$0xff]
        %v767 = vld [vmem:[%s1 + $0x68] sm:$0xf]
        %v768 = vld [vmem:[%s1 + $0x6c] sm:$0xff]
        %v769 = vld [vmem:[%s1 + $0x74] sm:$0xf]
        %v770 = vld [vmem:[%s1 + $0x78] sm:$0xff]
        %v771 = vld [vmem:[%s1 + $0x80] sm:$0xf]
        %v772 = vld [vmem:[%s1 + $0x84] sm:$0xff]
        %v773 = vld [vmem:[%s1 + $0x8c] sm:$0xf]
        %v774 = vld [vmem:[%s1 + $0x90] sm:$0xff]
        %v775 = vld [vmem:[%s1 + $0x98] sm:$0xf]
        %v776 = vld [vmem:[%s1 + $0x9c] sm:$0xff]
        %v777 = vld [vmem:[%s1 + $0xa4] sm:$0xf]
        %v778 = vld [vmem:[%s1 + $0xa8] sm:$0xff]
        %v779 = vld [vmem:[%s1 + $0xb0] sm:$0xf]
        %v780 = vld [vmem:[%s1 + $0xb4] sm:$0xff]
        %v781 = vld [vmem:[%s1 + $0xbc] sm:$0xf]
        %v782 = vld [vmem:[%s2] sm:$0xff]
        %v783 = vld [vmem:[%s2 + $0x8] sm:$0xff]
        %v784 = vld [vmem:[%s2 + $0x10] sm:$0xff]
        %v785 = vld [vmem:[%s2 + $0x18] sm:$0xff]
        %v786 = vld [vmem:[%s2 + $0x20] sm:$0xff]
        %v787 = vld [vmem:[%s2 + $0x28] sm:$0xff]
        %v788 = vld [vmem:[%s2 + $0x30] sm:$0xff]
        %v789 = vld [vmem:[%s2 + $0x38] sm:$0xff]
        %v790 = vld [vmem:[%s2 + $0x40] sm:$0xff]
        %v791 = vld [vmem:[%s2 + $0x48] sm:$0xff]
        %v792 = vld [vmem:[%s2 + $0x50] sm:$0xff]
        %v793 = vld [vmem:[%s2 + $0x58] sm:$0xff]
        %v794 = vld [vmem:[%s2 + $0x60] sm:$0xff]
        %v795 = vld [vmem:[%s2 + $0x68] sm:$0xff]
        %v796 = vld [vmem:[%s2 + $0x70] sm:$0xff]
        %v797 = vld [vmem:[%s2 + $0x78] sm:$0xff]
        %799 = vset.pattern.permute.xlu0 0
        %800 = vperm.xlu0 %799, %v782
        %v801 = vpop.permute.xlu0 %800
        %804 = vset.pattern.permute.xlu0 0
        %805 = vperm.xlu0 %804, %v783
        %v806 = vpop.permute.xlu0 %805
        %809 = vset.pattern.permute.xlu0 0
        %810 = vperm.xlu0 %809, %v784
        %v811 = vpop.permute.xlu0 %810
        %814 = vset.pattern.permute.xlu0 0
        %815 = vperm.xlu0 %814, %v785
        %v816 = vpop.permute.xlu0 %815
        %819 = vset.pattern.permute.xlu0 0
        %820 = vperm.xlu0 %819, %v786
        %v821 = vpop.permute.xlu0 %820
        %824 = vset.pattern.permute.xlu0 0
        %825 = vperm.xlu0 %824, %v787
        %v826 = vpop.permute.xlu0 %825
        %829 = vset.pattern.permute.xlu0 0
        %830 = vperm.xlu0 %829, %v788
        %v831 = vpop.permute.xlu0 %830
        %834 = vset.pattern.permute.xlu0 0
        %835 = vperm.xlu0 %834, %v789
        %v836 = vpop.permute.xlu0 %835
        %839 = vset.pattern.permute.xlu0 0
        %840 = vperm.xlu0 %839, %v790
        %v841 = vpop.permute.xlu0 %840
        %844 = vset.pattern.permute.xlu0 0
        %845 = vperm.xlu0 %844, %v791
        %v846 = vpop.permute.xlu0 %845
        %849 = vset.pattern.permute.xlu0 0
        %850 = vperm.xlu0 %849, %v792
        %v851 = vpop.permute.xlu0 %850
        %854 = vset.pattern.permute.xlu0 0
        %855 = vperm.xlu0 %854, %v793
        %v856 = vpop.permute.xlu0 %855
        %859 = vset.pattern.permute.xlu0 0
        %860 = vperm.xlu0 %859, %v794
        %v861 = vpop.permute.xlu0 %860
        %864 = vset.pattern.permute.xlu0 0
        %865 = vperm.xlu0 %864, %v795
        %v866 = vpop.permute.xlu0 %865
        %869 = vset.pattern.permute.xlu0 0
        %870 = vperm.xlu0 %869, %v796
        %v871 = vpop.permute.xlu0 %870
        %874 = vset.pattern.permute.xlu0 0
        %875 = vperm.xlu0 %874, %v797
        %v876 = vpop.permute.xlu0 %875
        %v910 = vunpack.c.l.b16 %v750
        %v911 = vunpack.c.h.b16 %v750
        %v912 = vunpack.c.l.b16 %v751
        %v913 = vunpack.c.l.b16 %v752
        %v914 = vunpack.c.h.b16 %v752
        %v915 = vunpack.c.l.b16 %v753
        %v916 = vunpack.c.l.b16 %v754
        %v917 = vunpack.c.h.b16 %v754
        %v918 = vunpack.c.l.b16 %v755
        %v919 = vunpack.c.l.b16 %v756
        %v920 = vunpack.c.h.b16 %v756
        %v921 = vunpack.c.l.b16 %v757
        %v922 = vunpack.c.l.b16 %v758
        %v923 = vunpack.c.h.b16 %v758
        %v924 = vunpack.c.l.b16 %v759
        %v925 = vunpack.c.l.b16 %v760
        %v926 = vunpack.c.h.b16 %v760
        %v927 = vunpack.c.l.b16 %v761
        %v928 = vunpack.c.l.b16 %v762
        %v929 = vunpack.c.h.b16 %v762
        %v930 = vunpack.c.l.b16 %v763
        %v931 = vunpack.c.l.b16 %v764
        %v932 = vunpack.c.h.b16 %v764
        %v933 = vunpack.c.l.b16 %v765
        %v934 = vunpack.c.l.b16 %v766
        %v935 = vunpack.c.h.b16 %v766
        %v936 = vunpack.c.l.b16 %v767
        %v937 = vunpack.c.l.b16 %v768
        %v938 = vunpack.c.h.b16 %v768
        %v939 = vunpack.c.l.b16 %v769
        %v940 = vunpack.c.l.b16 %v770
        %v941 = vunpack.c.h.b16 %v770
        %v942 = vunpack.c.l.b16 %v771
        %v943 = vunpack.c.l.b16 %v772
        %v944 = vunpack.c.h.b16 %v772
        %v945 = vunpack.c.l.b16 %v773
        %v946 = vunpack.c.l.b16 %v774
        %v947 = vunpack.c.h.b16 %v774
        %v948 = vunpack.c.l.b16 %v775
        %v949 = vunpack.c.l.b16 %v776
        %v950 = vunpack.c.h.b16 %v776
        %v951 = vunpack.c.l.b16 %v777
        %v952 = vunpack.c.l.b16 %v778
        %v953 = vunpack.c.h.b16 %v778
        %v954 = vunpack.c.l.b16 %v779
        %v955 = vunpack.c.l.b16 %v780
        %v956 = vunpack.c.h.b16 %v780
        %v957 = vunpack.c.l.b16 %v781
        %v958 = vpack.c.b16 %v913, %v910
        %v959 = vpack.c.b16 %v914, %v911
        %v960 = vpack.c.b16 %v915, %v912
        %v961 = vpack.c.b16 %v919, %v916
        %v962 = vpack.c.b16 %v920, %v917
        %v963 = vpack.c.b16 %v921, %v918
        %v964 = vpack.c.b16 %v925, %v922
        %v965 = vpack.c.b16 %v926, %v923
        %v966 = vpack.c.b16 %v927, %v924
        %v967 = vpack.c.b16 %v931, %v928
        %v968 = vpack.c.b16 %v932, %v929
        %v969 = vpack.c.b16 %v933, %v930
        %v970 = vpack.c.b16 %v937, %v934
        %v971 = vpack.c.b16 %v938, %v935
        %v972 = vpack.c.b16 %v939, %v936
        %v973 = vpack.c.b16 %v943, %v940
        %v974 = vpack.c.b16 %v944, %v941
        %v975 = vpack.c.b16 %v945, %v942
        %v976 = vpack.c.b16 %v949, %v946
        %v977 = vpack.c.b16 %v950, %v947
        %v978 = vpack.c.b16 %v951, %v948
        %v979 = vpack.c.b16 %v955, %v952
        %v980 = vpack.c.b16 %v956, %v953
        %v981 = vpack.c.b16 %v957, %v954
        %vm998 = vcmask 556032
        %v1000 = vsel %vm998, %v960, 0
        %v1003 = vsel %vm998, %v963, 0
        %v1006 = vsel %vm998, %v966, 0
        %v1009 = vsel %vm998, %v969, 0
        %v1012 = vsel %vm998, %v972, 0
        %v1015 = vsel %vm998, %v975, 0
        %v1018 = vsel %vm998, %v978, 0
        %v1021 = vsel %vm998, %v981, 0
        %v1024 = vsel %vm675, %v666, 0
        %v1027 = vsel %vm675, %v667, 0
        %v1030 = vsel %vm675, %v668, 0
        %1032 = vmatpush.bf16.msra.mxu0 %v469
        %1033 = vmatpush.bf16.msra.mxu0 %v704
        %1034 = vmatpush.bf16.msra.mxu0 %v411
        %1035 = vmatpush.bf16.msra.mxu0 %v691
        %1036 = vmatpush.bf16.msra.mxu0 %v362
        %1037 = vmatpush.bf16.msra.mxu0 %v678
        %1038 = vmatpush.bf16.msra.mxu0 %v293
        %1039 = vmatpush.bf16.msra.mxu0 %v290
        %1040 = vmatmul.bf16.gmra.mxu0 %v958
        %v1041 = vpop.f32.mrf.mxu0
        %v1042 = vadd.f32 %v801, %v1041
        %v1043 = vpop.f32.mrf.mxu0
        %v1044 = vadd.f32 %v806, %v1043
        %1045 = vmatmul.bf16.gmra.mxu0 %v961
        %v1046 = vpop.f32.mrf.mxu0
        %v1047 = vadd.f32 %v811, %v1046
        %v1048 = vpop.f32.mrf.mxu0
        %v1049 = vadd.f32 %v816, %v1048
        %1050 = vmatmul.bf16.gmra.mxu0 %v964
        %v1051 = vpop.f32.mrf.mxu0
        %v1052 = vadd.f32 %v821, %v1051
        %v1053 = vpop.f32.mrf.mxu0
        %v1054 = vadd.f32 %v826, %v1053
        %1055 = vmatmul.bf16.gmra.mxu0 %v967
        %v1056 = vpop.f32.mrf.mxu0
        %v1057 = vadd.f32 %v831, %v1056
        %v1058 = vpop.f32.mrf.mxu0
        %v1059 = vadd.f32 %v836, %v1058
        %1060 = vmatmul.bf16.gmra.mxu0 %v970
        %v1061 = vpop.f32.mrf.mxu0
        %v1062 = vadd.f32 %v841, %v1061
        %v1063 = vpop.f32.mrf.mxu0
        %v1064 = vadd.f32 %v846, %v1063
        %1065 = vmatmul.bf16.gmra.mxu0 %v973
        %v1066 = vpop.f32.mrf.mxu0
        %v1067 = vadd.f32 %v851, %v1066
        %v1068 = vpop.f32.mrf.mxu0
        %v1069 = vadd.f32 %v856, %v1068
        %1070 = vmatmul.bf16.gmra.mxu0 %v976
        %v1071 = vpop.f32.mrf.mxu0
        %v1072 = vadd.f32 %v861, %v1071
        %v1073 = vpop.f32.mrf.mxu0
        %v1074 = vadd.f32 %v866, %v1073
        %1075 = vmatmul.bf16.gmra.mxu0 %v979
        %v1076 = vpop.f32.mrf.mxu0
        %v1077 = vadd.f32 %v871, %v1076
        %v1078 = vpop.f32.mrf.mxu0
        %v1079 = vadd.f32 %v876, %v1078
        %1080 = vdwg.mxu0
        %1081 = vmatpush.bf16.msra.mxu0 %v740
        %1082 = vmatpush.bf16.msra.mxu0 %v586
        %1083 = vmatpush.bf16.msra.mxu0 %v728
        %1084 = vmatpush.bf16.msra.mxu0 %v549
        %1085 = vmatpush.bf16.msra.mxu0 %v716
        %1086 = vmatpush.bf16.msra.mxu0 %v509
        %1087 = vmatpush.bf16.msra.mxu0 %v506
        %1088 = vmatpush.bf16.msra.mxu0 %v472
        %1089 = vmatmul.bf16.gmra.mxu0 %v959
        %v1090 = vpop.f32.mrf.mxu0
        %v1091 = vadd.f32 %v1042, %v1090
        %v1092 = vpop.f32.mrf.mxu0
        %v1093 = vadd.f32 %v1044, %v1092
        %1094 = vmatmul.bf16.gmra.mxu0 %v962
        %v1095 = vpop.f32.mrf.mxu0
        %v1096 = vadd.f32 %v1047, %v1095
        %v1097 = vpop.f32.mrf.mxu0
        %v1098 = vadd.f32 %v1049, %v1097
        %1099 = vmatmul.bf16.gmra.mxu0 %v965
        %v1100 = vpop.f32.mrf.mxu0
        %v1101 = vadd.f32 %v1052, %v1100
        %v1102 = vpop.f32.mrf.mxu0
        %v1103 = vadd.f32 %v1054, %v1102
        %1104 = vmatmul.bf16.gmra.mxu0 %v968
        %v1105 = vpop.f32.mrf.mxu0
        %v1106 = vadd.f32 %v1057, %v1105
        %v1107 = vpop.f32.mrf.mxu0
        %v1108 = vadd.f32 %v1059, %v1107
        %1109 = vmatmul.bf16.gmra.mxu0 %v971
        %v1110 = vpop.f32.mrf.mxu0
        %v1111 = vadd.f32 %v1062, %v1110
        %v1112 = vpop.f32.mrf.mxu0
        %v1113 = vadd.f32 %v1064, %v1112
        %1114 = vmatmul.bf16.gmra.mxu0 %v974
        %v1115 = vpop.f32.mrf.mxu0
        %v1116 = vadd.f32 %v1067, %v1115
        %v1117 = vpop.f32.mrf.mxu0
        %v1118 = vadd.f32 %v1069, %v1117
        %1119 = vmatmul.bf16.gmra.mxu0 %v977
        %v1120 = vpop.f32.mrf.mxu0
        %v1121 = vadd.f32 %v1072, %v1120
        %v1122 = vpop.f32.mrf.mxu0
        %v1123 = vadd.f32 %v1074, %v1122
        %1124 = vmatmul.bf16.gmra.mxu0 %v980
        %v1125 = vpop.f32.mrf.mxu0
        %v1126 = vadd.f32 %v1077, %v1125
        %v1127 = vpop.f32.mrf.mxu0
        %v1128 = vadd.f32 %v1079, %v1127
        %1129 = vdwg.mxu0
        %1130 = vmatpush.bf16.msra.mxu0 0
        %1131 = vmatpush.bf16.msra.mxu0 0
        %1132 = vmatpush.bf16.msra.mxu0 0
        %1133 = vmatpush.bf16.msra.mxu0 %v1024
        %1134 = vmatpush.bf16.msra.mxu0 %v663
        %1135 = vmatpush.bf16.msra.mxu0 %v660
        %1136 = vmatpush.bf16.msra.mxu0 %v626
        %1137 = vmatpush.bf16.msra.mxu0 %v623
        %1138 = vmatmul.bf16.gmra.mxu0 %v1000
        %v1139 = vpop.f32.mrf.mxu0
        %v1140 = vadd.f32 %v1091, %v1139
        %v1141 = vpop.f32.mrf.mxu0
        %v1142 = vadd.f32 %v1093, %v1141
        %1143 = vmatmul.bf16.gmra.mxu0 %v1003
        %v1144 = vpop.f32.mrf.mxu0
        %v1145 = vadd.f32 %v1096, %v1144
        %v1146 = vpop.f32.mrf.mxu0
        %v1147 = vadd.f32 %v1098, %v1146
        %1148 = vmatmul.bf16.gmra.mxu0 %v1006
        %v1149 = vpop.f32.mrf.mxu0
        %v1150 = vadd.f32 %v1101, %v1149
        %v1151 = vpop.f32.mrf.mxu0
        %v1152 = vadd.f32 %v1103, %v1151
        %1153 = vmatmul.bf16.gmra.mxu0 %v1009
        %v1154 = vpop.f32.mrf.mxu0
        %v1155 = vadd.f32 %v1106, %v1154
        %v1156 = vpop.f32.mrf.mxu0
        %v1157 = vadd.f32 %v1108, %v1156
        %1158 = vmatmul.bf16.gmra.mxu0 %v1012
        %v1159 = vpop.f32.mrf.mxu0
        %v1160 = vadd.f32 %v1111, %v1159
        %v1161 = vpop.f32.mrf.mxu0
        %v1162 = vadd.f32 %v1113, %v1161
        %1163 = vmatmul.bf16.gmra.mxu0 %v1015
        %v1164 = vpop.f32.mrf.mxu0
        %v1165 = vadd.f32 %v1116, %v1164
        %v1166 = vpop.f32.mrf.mxu0
        %v1167 = vadd.f32 %v1118, %v1166
        %1168 = vmatmul.bf16.gmra.mxu0 %v1018
        %v1169 = vpop.f32.mrf.mxu0
        %v1170 = vadd.f32 %v1121, %v1169
        %v1171 = vpop.f32.mrf.mxu0
        %v1172 = vadd.f32 %v1123, %v1171
        %1173 = vmatmul.bf16.gmra.mxu0 %v1021
        %v1174 = vpop.f32.mrf.mxu0
        %v1175 = vadd.f32 %v1126, %v1174
        %v1176 = vpop.f32.mrf.mxu0
        %v1177 = vadd.f32 %v1128, %v1176
        %1178 = vdwg.mxu0
        %1179 = vmatpush.bf16.msra.mxu0 %v470
        %1180 = vmatpush.bf16.msra.mxu0 %v708
        %1181 = vmatpush.bf16.msra.mxu0 %v412
        %1182 = vmatpush.bf16.msra.mxu0 %v695
        %1183 = vmatpush.bf16.msra.mxu0 %v363
        %1184 = vmatpush.bf16.msra.mxu0 %v682
        %1185 = vmatpush.bf16.msra.mxu0 %v294
        %1186 = vmatpush.bf16.msra.mxu0 %v291
        %1187 = vmatmul.bf16.gmra.mxu0 %v958
        %v1188 = vpop.f32.mrf.mxu0
        %v1189 = vadd.f32 %v801, %v1188
        %v1190 = vpop.f32.mrf.mxu0
        %v1191 = vadd.f32 %v806, %v1190
        %1192 = vmatmul.bf16.gmra.mxu0 %v961
        %v1193 = vpop.f32.mrf.mxu0
        %v1194 = vadd.f32 %v811, %v1193
        %v1195 = vpop.f32.mrf.mxu0
        %v1196 = vadd.f32 %v816, %v1195
        %1197 = vmatmul.bf16.gmra.mxu0 %v964
        %v1198 = vpop.f32.mrf.mxu0
        %v1199 = vadd.f32 %v821, %v1198
        %v1200 = vpop.f32.mrf.mxu0
        %v1201 = vadd.f32 %v826, %v1200
        %1202 = vmatmul.bf16.gmra.mxu0 %v967
        %v1203 = vpop.f32.mrf.mxu0
        %v1204 = vadd.f32 %v831, %v1203
        %v1205 = vpop.f32.mrf.mxu0
        %v1206 = vadd.f32 %v836, %v1205
        %1207 = vmatmul.bf16.gmra.mxu0 %v970
        %v1208 = vpop.f32.mrf.mxu0
        %v1209 = vadd.f32 %v841, %v1208
        %v1210 = vpop.f32.mrf.mxu0
        %v1211 = vadd.f32 %v846, %v1210
        %1212 = vmatmul.bf16.gmra.mxu0 %v973
        %v1213 = vpop.f32.mrf.mxu0
        %v1214 = vadd.f32 %v851, %v1213
        %v1215 = vpop.f32.mrf.mxu0
        %v1216 = vadd.f32 %v856, %v1215
        %1217 = vmatmul.bf16.gmra.mxu0 %v976
        %v1218 = vpop.f32.mrf.mxu0
        %v1219 = vadd.f32 %v861, %v1218
        %v1220 = vpop.f32.mrf.mxu0
        %v1221 = vadd.f32 %v866, %v1220
        %1222 = vmatmul.bf16.gmra.mxu0 %v979
        %v1223 = vpop.f32.mrf.mxu0
        %v1224 = vadd.f32 %v871, %v1223
        %v1225 = vpop.f32.mrf.mxu0
        %v1226 = vadd.f32 %v876, %v1225
        %1227 = vdwg.mxu0
        %1228 = vmatpush.bf16.msra.mxu0 %v744
        %1229 = vmatpush.bf16.msra.mxu0 %v587
        %1230 = vmatpush.bf16.msra.mxu0 %v732
        %1231 = vmatpush.bf16.msra.mxu0 %v550
        %1232 = vmatpush.bf16.msra.mxu0 %v720
        %1233 = vmatpush.bf16.msra.mxu0 %v510
        %1234 = vmatpush.bf16.msra.mxu0 %v507
        %1235 = vmatpush.bf16.msra.mxu0 %v473
        %1236 = vmatmul.bf16.gmra.mxu0 %v959
        %v1237 = vpop.f32.mrf.mxu0
        %v1238 = vadd.f32 %v1189, %v1237
        %v1239 = vpop.f32.mrf.mxu0
        %v1240 = vadd.f32 %v1191, %v1239
        %1241 = vmatmul.bf16.gmra.mxu0 %v962
        %v1242 = vpop.f32.mrf.mxu0
        %v1243 = vadd.f32 %v1194, %v1242
        %v1244 = vpop.f32.mrf.mxu0
        %v1245 = vadd.f32 %v1196, %v1244
        %1246 = vmatmul.bf16.gmra.mxu0 %v965
        %v1247 = vpop.f32.mrf.mxu0
        %v1248 = vadd.f32 %v1199, %v1247
        %v1249 = vpop.f32.mrf.mxu0
        %v1250 = vadd.f32 %v1201, %v1249
        %1251 = vmatmul.bf16.gmra.mxu0 %v968
        %v1252 = vpop.f32.mrf.mxu0
        %v1253 = vadd.f32 %v1204, %v1252
        %v1254 = vpop.f32.mrf.mxu0
        %v1255 = vadd.f32 %v1206, %v1254
        %1256 = vmatmul.bf16.gmra.mxu0 %v971
        %v1257 = vpop.f32.mrf.mxu0
        %v1258 = vadd.f32 %v1209, %v1257
        %v1259 = vpop.f32.mrf.mxu0
        %v1260 = vadd.f32 %v1211, %v1259
        %1261 = vmatmul.bf16.gmra.mxu0 %v974
        %v1262 = vpop.f32.mrf.mxu0
        %v1263 = vadd.f32 %v1214, %v1262
        %v1264 = vpop.f32.mrf.mxu0
        %v1265 = vadd.f32 %v1216, %v1264
        %1266 = vmatmul.bf16.gmra.mxu0 %v977
        %v1267 = vpop.f32.mrf.mxu0
        %v1268 = vadd.f32 %v1219, %v1267
        %v1269 = vpop.f32.mrf.mxu0
        %v1270 = vadd.f32 %v1221, %v1269
        %1271 = vmatmul.bf16.gmra.mxu0 %v980
        %v1272 = vpop.f32.mrf.mxu0
        %v1273 = vadd.f32 %v1224, %v1272
        %v1274 = vpop.f32.mrf.mxu0
        %v1275 = vadd.f32 %v1226, %v1274
        %1276 = vdwg.mxu0
        %1277 = vmatpush.bf16.msra.mxu0 0
        %1278 = vmatpush.bf16.msra.mxu0 0
        %1279 = vmatpush.bf16.msra.mxu0 0
        %1280 = vmatpush.bf16.msra.mxu0 %v1027
        %1281 = vmatpush.bf16.msra.mxu0 %v664
        %1282 = vmatpush.bf16.msra.mxu0 %v661
        %1283 = vmatpush.bf16.msra.mxu0 %v627
        %1284 = vmatpush.bf16.msra.mxu0 %v624
        %1285 = vmatmul.bf16.gmra.mxu0 %v1000
        %v1286 = vpop.f32.mrf.mxu0
        %v1287 = vadd.f32 %v1238, %v1286
        %v1288 = vpop.f32.mrf.mxu0
        %v1289 = vadd.f32 %v1240, %v1288
        %1290 = vmatmul.bf16.gmra.mxu0 %v1003
        %v1291 = vpop.f32.mrf.mxu0
        %v1292 = vadd.f32 %v1243, %v1291
        %v1293 = vpop.f32.mrf.mxu0
        %v1294 = vadd.f32 %v1245, %v1293
        %1295 = vmatmul.bf16.gmra.mxu0 %v1006
        %v1296 = vpop.f32.mrf.mxu0
        %v1297 = vadd.f32 %v1248, %v1296
        %v1298 = vpop.f32.mrf.mxu0
        %v1299 = vadd.f32 %v1250, %v1298
        %1300 = vmatmul.bf16.gmra.mxu0 %v1009
        %v1301 = vpop.f32.mrf.mxu0
        %v1302 = vadd.f32 %v1253, %v1301
        %v1303 = vpop.f32.mrf.mxu0
        %v1304 = vadd.f32 %v1255, %v1303
        %1305 = vmatmul.bf16.gmra.mxu0 %v1012
        %v1306 = vpop.f32.mrf.mxu0
        %v1307 = vadd.f32 %v1258, %v1306
        %v1308 = vpop.f32.mrf.mxu0
        %v1309 = vadd.f32 %v1260, %v1308
        %1310 = vmatmul.bf16.gmra.mxu0 %v1015
        %v1311 = vpop.f32.mrf.mxu0
        %v1312 = vadd.f32 %v1263, %v1311
        %v1313 = vpop.f32.mrf.mxu0
        %v1314 = vadd.f32 %v1265, %v1313
        %1315 = vmatmul.bf16.gmra.mxu0 %v1018
        %v1316 = vpop.f32.mrf.mxu0
        %v1317 = vadd.f32 %v1268, %v1316
        %v1318 = vpop.f32.mrf.mxu0
        %v1319 = vadd.f32 %v1270, %v1318
        %1320 = vmatmul.bf16.gmra.mxu0 %v1021
        %v1321 = vpop.f32.mrf.mxu0
        %v1322 = vadd.f32 %v1273, %v1321
        %v1323 = vpop.f32.mrf.mxu0
        %v1324 = vadd.f32 %v1275, %v1323
        %1325 = vdwg.mxu0
        %1326 = vmatpush.bf16.msra.mxu0 %v471
        %1327 = vmatpush.bf16.msra.mxu0 %v712
        %1328 = vmatpush.bf16.msra.mxu0 %v413
        %1329 = vmatpush.bf16.msra.mxu0 %v699
        %1330 = vmatpush.bf16.msra.mxu0 %v364
        %1331 = vmatpush.bf16.msra.mxu0 %v686
        %1332 = vmatpush.bf16.msra.mxu0 %v295
        %1333 = vmatpush.bf16.msra.mxu0 %v292
        %1334 = vmatmul.bf16.gmra.mxu0 %v958
        %v1335 = vpop.f32.mrf.mxu0
        %v1336 = vadd.f32 %v801, %v1335
        %v1337 = vpop.f32.mrf.mxu0
        %v1338 = vadd.f32 %v806, %v1337
        %1339 = vmatmul.bf16.gmra.mxu0 %v961
        %v1340 = vpop.f32.mrf.mxu0
        %v1341 = vadd.f32 %v811, %v1340
        %v1342 = vpop.f32.mrf.mxu0
        %v1343 = vadd.f32 %v816, %v1342
        %1344 = vmatmul.bf16.gmra.mxu0 %v964
        %v1345 = vpop.f32.mrf.mxu0
        %v1346 = vadd.f32 %v821, %v1345
        %v1347 = vpop.f32.mrf.mxu0
        %v1348 = vadd.f32 %v826, %v1347
        %1349 = vmatmul.bf16.gmra.mxu0 %v967
        %v1350 = vpop.f32.mrf.mxu0
        %v1351 = vadd.f32 %v831, %v1350
        %v1352 = vpop.f32.mrf.mxu0
        %v1353 = vadd.f32 %v836, %v1352
        %1354 = vmatmul.bf16.gmra.mxu0 %v970
        %v1355 = vpop.f32.mrf.mxu0
        %v1356 = vadd.f32 %v841, %v1355
        %v1357 = vpop.f32.mrf.mxu0
        %v1358 = vadd.f32 %v846, %v1357
        %1359 = vmatmul.bf16.gmra.mxu0 %v973
        %v1360 = vpop.f32.mrf.mxu0
        %v1361 = vadd.f32 %v851, %v1360
        %v1362 = vpop.f32.mrf.mxu0
        %v1363 = vadd.f32 %v856, %v1362
        %1364 = vmatmul.bf16.gmra.mxu0 %v976
        %v1365 = vpop.f32.mrf.mxu0
        %v1366 = vadd.f32 %v861, %v1365
        %v1367 = vpop.f32.mrf.mxu0
        %v1368 = vadd.f32 %v866, %v1367
        %1369 = vmatmul.bf16.gmra.mxu0 %v979
        %v1370 = vpop.f32.mrf.mxu0
        %v1371 = vadd.f32 %v871, %v1370
        %v1372 = vpop.f32.mrf.mxu0
        %v1373 = vadd.f32 %v876, %v1372
        %1374 = vdwg.mxu0
        %1375 = vmatpush.bf16.msra.mxu0 %v748
        %1376 = vmatpush.bf16.msra.mxu0 %v588
        %1377 = vmatpush.bf16.msra.mxu0 %v736
        %1378 = vmatpush.bf16.msra.mxu0 %v551
        %1379 = vmatpush.bf16.msra.mxu0 %v724
        %1380 = vmatpush.bf16.msra.mxu0 %v511
        %1381 = vmatpush.bf16.msra.mxu0 %v508
        %1382 = vmatpush.bf16.msra.mxu0 %v474
        %1383 = vmatmul.bf16.gmra.mxu0 %v959
        %v1384 = vpop.f32.mrf.mxu0
        %v1385 = vadd.f32 %v1336, %v1384
        %v1386 = vpop.f32.mrf.mxu0
        %v1387 = vadd.f32 %v1338, %v1386
        %1388 = vmatmul.bf16.gmra.mxu0 %v962
        %v1389 = vpop.f32.mrf.mxu0
        %v1390 = vadd.f32 %v1341, %v1389
        %v1391 = vpop.f32.mrf.mxu0
        %v1392 = vadd.f32 %v1343, %v1391
        %1393 = vmatmul.bf16.gmra.mxu0 %v965
        %v1394 = vpop.f32.mrf.mxu0
        %v1395 = vadd.f32 %v1346, %v1394
        %v1396 = vpop.f32.mrf.mxu0
        %v1397 = vadd.f32 %v1348, %v1396
        %1398 = vmatmul.bf16.gmra.mxu0 %v968
        %v1399 = vpop.f32.mrf.mxu0
        %v1400 = vadd.f32 %v1351, %v1399
        %v1401 = vpop.f32.mrf.mxu0
        %v1402 = vadd.f32 %v1353, %v1401
        %1403 = vmatmul.bf16.gmra.mxu0 %v971
        %v1404 = vpop.f32.mrf.mxu0
        %v1405 = vadd.f32 %v1356, %v1404
        %v1406 = vpop.f32.mrf.mxu0
        %v1407 = vadd.f32 %v1358, %v1406
        %1408 = vmatmul.bf16.gmra.mxu0 %v974
        %v1409 = vpop.f32.mrf.mxu0
        %v1410 = vadd.f32 %v1361, %v1409
        %v1411 = vpop.f32.mrf.mxu0
        %v1412 = vadd.f32 %v1363, %v1411
        %1413 = vmatmul.bf16.gmra.mxu0 %v977
        %v1414 = vpop.f32.mrf.mxu0
        %v1415 = vadd.f32 %v1366, %v1414
        %v1416 = vpop.f32.mrf.mxu0
        %v1417 = vadd.f32 %v1368, %v1416
        %1418 = vmatmul.bf16.gmra.mxu0 %v980
        %v1419 = vpop.f32.mrf.mxu0
        %v1420 = vadd.f32 %v1371, %v1419
        %v1421 = vpop.f32.mrf.mxu0
        %v1422 = vadd.f32 %v1373, %v1421
        %1423 = vdwg.mxu0
        %1424 = vmatpush.bf16.msra.mxu0 0
        %1425 = vmatpush.bf16.msra.mxu0 0
        %1426 = vmatpush.bf16.msra.mxu0 0
        %1427 = vmatpush.bf16.msra.mxu0 %v1030
        %1428 = vmatpush.bf16.msra.mxu0 %v665
        %1429 = vmatpush.bf16.msra.mxu0 %v662
        %1430 = vmatpush.bf16.msra.mxu0 %v628
        %1431 = vmatpush.bf16.msra.mxu0 %v625
        %1432 = vmatmul.bf16.gmra.mxu0 %v1000
        %v1433 = vpop.f32.mrf.mxu0
        %v1434 = vadd.f32 %v1385, %v1433
        %v1435 = vpop.f32.mrf.mxu0
        %v1436 = vadd.f32 %v1387, %v1435
        %1437 = vmatmul.bf16.gmra.mxu0 %v1003
        %v1438 = vpop.f32.mrf.mxu0
        %v1439 = vadd.f32 %v1390, %v1438
        %v1440 = vpop.f32.mrf.mxu0
        %v1441 = vadd.f32 %v1392, %v1440
        %1442 = vmatmul.bf16.gmra.mxu0 %v1006
        %v1443 = vpop.f32.mrf.mxu0
        %v1444 = vadd.f32 %v1395, %v1443
        %v1445 = vpop.f32.mrf.mxu0
        %v1446 = vadd.f32 %v1397, %v1445
        %1447 = vmatmul.bf16.gmra.mxu0 %v1009
        %v1448 = vpop.f32.mrf.mxu0
        %v1449 = vadd.f32 %v1400, %v1448
        %v1450 = vpop.f32.mrf.mxu0
        %v1451 = vadd.f32 %v1402, %v1450
        %1452 = vmatmul.bf16.gmra.mxu0 %v1012
        %v1453 = vpop.f32.mrf.mxu0
        %v1454 = vadd.f32 %v1405, %v1453
        %v1455 = vpop.f32.mrf.mxu0
        %v1456 = vadd.f32 %v1407, %v1455
        %1457 = vmatmul.bf16.gmra.mxu0 %v1015
        %v1458 = vpop.f32.mrf.mxu0
        %v1459 = vadd.f32 %v1410, %v1458
        %v1460 = vpop.f32.mrf.mxu0
        %v1461 = vadd.f32 %v1412, %v1460
        %1462 = vmatmul.bf16.gmra.mxu0 %v1018
        %v1463 = vpop.f32.mrf.mxu0
        %v1464 = vadd.f32 %v1415, %v1463
        %v1465 = vpop.f32.mrf.mxu0
        %v1466 = vadd.f32 %v1417, %v1465
        %1467 = vmatmul.bf16.gmra.mxu0 %v1021
        %v1468 = vpop.f32.mrf.mxu0
        %v1469 = vadd.f32 %v1420, %v1468
        %v1470 = vpop.f32.mrf.mxu0
        %v1471 = vadd.f32 %v1422, %v1470
        %1472 = vdwg.mxu0
        %v1473 = vmul.f32 %v1140, 0.2
        %v1474 = vmul.f32 %v1287, 0.2
        %v1475 = vmul.f32 %v1434, 0.2
        %v1476 = vmul.f32 %v1142, 0.2
        %v1477 = vmul.f32 %v1289, 0.2
        %v1478 = vmul.f32 %v1436, 0.2
        %v1479 = vmul.f32 %v1145, 0.2
        %v1480 = vmul.f32 %v1292, 0.2
        %v1481 = vmul.f32 %v1439, 0.2
        %v1482 = vmul.f32 %v1147, 0.2
        %v1483 = vmul.f32 %v1294, 0.2
        %v1484 = vmul.f32 %v1441, 0.2
        %v1485 = vadd.f32 %v1473, 0.5
        %v1486 = vadd.f32 %v1474, 0.5
        %v1487 = vadd.f32 %v1475, 0.5
        %v1488 = vadd.f32 %v1476, 0.5
        %v1489 = vadd.f32 %v1477, 0.5
        %v1490 = vadd.f32 %v1478, 0.5
        %v1491 = vadd.f32 %v1479, 0.5
        %v1492 = vadd.f32 %v1480, 0.5
        %v1493 = vadd.f32 %v1481, 0.5
        %v1494 = vadd.f32 %v1482, 0.5
        %v1495 = vadd.f32 %v1483, 0.5
        %v1496 = vadd.f32 %v1484, 0.5
        %v1497 = vmax.f32 %v1485, 0.0
        %v1498 = vmax.f32 %v1486, 0.0
        %v1499 = vmax.f32 %v1487, 0.0
        %v1500 = vmax.f32 %v1488, 0.0
        %v1501 = vmax.f32 %v1489, 0.0
        %v1502 = vmax.f32 %v1490, 0.0
        %v1503 = vmax.f32 %v1491, 0.0
        %v1504 = vmax.f32 %v1492, 0.0
        %v1505 = vmax.f32 %v1493, 0.0
        %v1506 = vmax.f32 %v1494, 0.0
        %v1507 = vmax.f32 %v1495, 0.0
        %v1508 = vmax.f32 %v1496, 0.0
        %v1509 = vmin.f32 %v1497, 1.0
        %v1510 = vmin.f32 %v1498, 1.0
        %v1511 = vmin.f32 %v1499, 1.0
        %v1512 = vmin.f32 %v1500, 1.0
        %v1513 = vmin.f32 %v1501, 1.0
        %v1514 = vmin.f32 %v1502, 1.0
        %v1515 = vmin.f32 %v1503, 1.0
        %v1516 = vmin.f32 %v1504, 1.0
        %v1517 = vmin.f32 %v1505, 1.0
        %v1518 = vmin.f32 %v1506, 1.0
        %v1519 = vmin.f32 %v1507, 1.0
        %v1520 = vmin.f32 %v1508, 1.0
        %v1521 = vmul.f32 %v1150, 0.2
        %v1522 = vmul.f32 %v1297, 0.2
        %v1523 = vmul.f32 %v1444, 0.2
        %v1524 = vmul.f32 %v1152, 0.2
        %v1525 = vmul.f32 %v1299, 0.2
        %v1526 = vmul.f32 %v1446, 0.2
        %v1527 = vmul.f32 %v1155, 0.2
        %v1528 = vmul.f32 %v1302, 0.2
        %v1529 = vmul.f32 %v1449, 0.2
        %v1530 = vmul.f32 %v1157, 0.2
        %v1531 = vmul.f32 %v1304, 0.2
        %v1532 = vmul.f32 %v1451, 0.2
        %v1533 = vadd.f32 %v1521, 0.5
        %v1534 = vadd.f32 %v1522, 0.5
        %v1535 = vadd.f32 %v1523, 0.5
        %v1536 = vadd.f32 %v1524, 0.5
        %v1537 = vadd.f32 %v1525, 0.5
        %v1538 = vadd.f32 %v1526, 0.5
        %v1539 = vadd.f32 %v1527, 0.5
        %v1540 = vadd.f32 %v1528, 0.5
        %v1541 = vadd.f32 %v1529, 0.5
        %v1542 = vadd.f32 %v1530, 0.5
        %v1543 = vadd.f32 %v1531, 0.5
        %v1544 = vadd.f32 %v1532, 0.5
        %v1545 = vmax.f32 %v1533, 0.0
        %v1546 = vmax.f32 %v1534, 0.0
        %v1547 = vmax.f32 %v1535, 0.0
        %v1548 = vmax.f32 %v1536, 0.0
        %v1549 = vmax.f32 %v1537, 0.0
        %v1550 = vmax.f32 %v1538, 0.0
        %v1551 = vmax.f32 %v1539, 0.0
        %v1552 = vmax.f32 %v1540, 0.0
        %v1553 = vmax.f32 %v1541, 0.0
        %v1554 = vmax.f32 %v1542, 0.0
        %v1555 = vmax.f32 %v1543, 0.0
        %v1556 = vmax.f32 %v1544, 0.0
        %v1557 = vmin.f32 %v1545, 1.0
        %v1558 = vmin.f32 %v1546, 1.0
        %v1559 = vmin.f32 %v1547, 1.0
        %v1560 = vmin.f32 %v1548, 1.0
        %v1561 = vmin.f32 %v1549, 1.0
        %v1562 = vmin.f32 %v1550, 1.0
        %v1563 = vmin.f32 %v1551, 1.0
        %v1564 = vmin.f32 %v1552, 1.0
        %v1565 = vmin.f32 %v1553, 1.0
        %v1566 = vmin.f32 %v1554, 1.0
        %v1567 = vmin.f32 %v1555, 1.0
        %v1568 = vmin.f32 %v1556, 1.0
        %v1569 = vmul.f32 %v1160, 0.2
        %v1570 = vmul.f32 %v1307, 0.2
        %v1571 = vmul.f32 %v1454, 0.2
        %v1572 = vmul.f32 %v1162, 0.2
        %v1573 = vmul.f32 %v1309, 0.2
        %v1574 = vmul.f32 %v1456, 0.2
        %v1575 = vmul.f32 %v1165, 0.2
        %v1576 = vmul.f32 %v1312, 0.2
        %v1577 = vmul.f32 %v1459, 0.2
        %v1578 = vmul.f32 %v1167, 0.2
        %v1579 = vmul.f32 %v1314, 0.2
        %v1580 = vmul.f32 %v1461, 0.2
        %v1581 = vadd.f32 %v1569, 0.5
        %v1582 = vadd.f32 %v1570, 0.5
        %v1583 = vadd.f32 %v1571, 0.5
        %v1584 = vadd.f32 %v1572, 0.5
        %v1585 = vadd.f32 %v1573, 0.5
        %v1586 = vadd.f32 %v1574, 0.5
        %v1587 = vadd.f32 %v1575, 0.5
        %v1588 = vadd.f32 %v1576, 0.5
        %v1589 = vadd.f32 %v1577, 0.5
        %v1590 = vadd.f32 %v1578, 0.5
        %v1591 = vadd.f32 %v1579, 0.5
        %v1592 = vadd.f32 %v1580, 0.5
        %v1593 = vmax.f32 %v1581, 0.0
        %v1594 = vmax.f32 %v1582, 0.0
        %v1595 = vmax.f32 %v1583, 0.0
        %v1596 = vmax.f32 %v1584, 0.0
        %v1597 = vmax.f32 %v1585, 0.0
        %v1598 = vmax.f32 %v1586, 0.0
        %v1599 = vmax.f32 %v1587, 0.0
        %v1600 = vmax.f32 %v1588, 0.0
        %v1601 = vmax.f32 %v1589, 0.0
        %v1602 = vmax.f32 %v1590, 0.0
        %v1603 = vmax.f32 %v1591, 0.0
        %v1604 = vmax.f32 %v1592, 0.0
        %v1605 = vmin.f32 %v1593, 1.0
        %v1606 = vmin.f32 %v1594, 1.0
        %v1607 = vmin.f32 %v1595, 1.0
        %v1608 = vmin.f32 %v1596, 1.0
        %v1609 = vmin.f32 %v1597, 1.0
        %v1610 = vmin.f32 %v1598, 1.0
        %v1611 = vmin.f32 %v1599, 1.0
        %v1612 = vmin.f32 %v1600, 1.0
        %v1613 = vmin.f32 %v1601, 1.0
        %v1614 = vmin.f32 %v1602, 1.0
        %v1615 = vmin.f32 %v1603, 1.0
        %v1616 = vmin.f32 %v1604, 1.0
        %v1617 = vtanh.pop %v1170
        %v1618 = vtanh.pop %v1317
        %v1619 = vtanh.pop %v1464
        %v1620 = vtanh.pop %v1172
        %v1621 = vtanh.pop %v1319
        %v1622 = vtanh.pop %v1466
        %v1623 = vtanh.pop %v1175
        %v1624 = vtanh.pop %v1322
        %v1625 = vtanh.pop %v1469
        %v1626 = vtanh.pop %v1177
        %v1627 = vtanh.pop %v1324
        %v1628 = vtanh.pop %v1471
        %v1629 = vld [vmem:[%s253] sm:$0xff]
        %v1630 = vld [vmem:[%s253 + $0x8] sm:$0xff]
        %v1631 = vld [vmem:[%s253 + $0x10] sm:$0xff]
        %v1632 = vld [vmem:[%s253 + $0x18] sm:$0xff]
        %v1633 = vld [vmem:[%s253 + $0x20] sm:$0xff]
        %v1634 = vld [vmem:[%s253 + $0x28] sm:$0xff]
        %v1635 = vld [vmem:[%s253 + $0x30] sm:$0xff]
        %v1636 = vld [vmem:[%s253 + $0x38] sm:$0xff]
        %v1637 = vld [vmem:[%s253 + $0x40] sm:$0xff]
        %v1638 = vld [vmem:[%s253 + $0x48] sm:$0xff]
        %v1639 = vld [vmem:[%s253 + $0x50] sm:$0xff]
        %v1640 = vld [vmem:[%s253 + $0x58] sm:$0xff]
        %v1641 = vmul.f32 %v1557, %v1629
        %v1642 = vmul.f32 %v1558, %v1630
        %v1643 = vmul.f32 %v1559, %v1631
        %v1644 = vmul.f32 %v1560, %v1632
        %v1645 = vmul.f32 %v1561, %v1633
        %v1646 = vmul.f32 %v1562, %v1634
        %v1647 = vmul.f32 %v1563, %v1635
        %v1648 = vmul.f32 %v1564, %v1636
        %v1649 = vmul.f32 %v1565, %v1637
        %v1650 = vmul.f32 %v1566, %v1638
        %v1651 = vmul.f32 %v1567, %v1639
        %v1652 = vmul.f32 %v1568, %v1640
        %v1653 = vmul.f32 %v1509, %v1617
        %v1654 = vmul.f32 %v1510, %v1618
        %v1655 = vmul.f32 %v1511, %v1619
        %v1656 = vmul.f32 %v1512, %v1620
        %v1657 = vmul.f32 %v1513, %v1621
        %v1658 = vmul.f32 %v1514, %v1622
        %v1659 = vmul.f32 %v1515, %v1623
        %v1660 = vmul.f32 %v1516, %v1624
        %v1661 = vmul.f32 %v1517, %v1625
        %v1662 = vmul.f32 %v1518, %v1626
        %v1663 = vmul.f32 %v1519, %v1627
        %v1664 = vmul.f32 %v1520, %v1628
        %v1665 = vadd.f32 %v1641, %v1653
        %v1666 = vadd.f32 %v1642, %v1654
        %v1667 = vadd.f32 %v1643, %v1655
        %v1668 = vadd.f32 %v1644, %v1656
        %v1669 = vadd.f32 %v1645, %v1657
        %v1670 = vadd.f32 %v1646, %v1658
        %v1671 = vadd.f32 %v1647, %v1659
        %v1672 = vadd.f32 %v1648, %v1660
        %v1673 = vadd.f32 %v1649, %v1661
        %v1674 = vadd.f32 %v1650, %v1662
        %v1675 = vadd.f32 %v1651, %v1663
        %v1676 = vadd.f32 %v1652, %v1664
        %v1677 = vtanh.pop %v1665
        %v1678 = vtanh.pop %v1666
        %v1679 = vtanh.pop %v1667
        %v1680 = vtanh.pop %v1668
        %v1681 = vtanh.pop %v1669
        %v1682 = vtanh.pop %v1670
        %v1683 = vtanh.pop %v1671
        %v1684 = vtanh.pop %v1672
        %v1685 = vtanh.pop %v1673
        %v1686 = vtanh.pop %v1674
        %v1687 = vtanh.pop %v1675
        %v1688 = vtanh.pop %v1676
        %v1689 = vmul.f32 %v1605, %v1677
        %v1690 = vmul.f32 %v1606, %v1678
        %v1691 = vmul.f32 %v1607, %v1679
        %v1692 = vmul.f32 %v1608, %v1680
        %v1693 = vmul.f32 %v1609, %v1681
        %v1694 = vmul.f32 %v1610, %v1682
        %v1695 = vmul.f32 %v1611, %v1683
        %v1696 = vmul.f32 %v1612, %v1684
        %v1697 = vmul.f32 %v1613, %v1685
        %v1698 = vmul.f32 %v1614, %v1686
        %v1699 = vmul.f32 %v1615, %v1687
        %v1700 = vmul.f32 %v1616, %v1688
        %1701 = vst [vmem:[%s236] sm:$0xff] %v1689
        %1702 = vst [vmem:[%s236 + $0x8] sm:$0xff] %v1690
        %1703 = vst [vmem:[%s236 + $0x10] sm:$0xff] %v1691
        %1704 = vst [vmem:[%s236 + $0x18] sm:$0xff] %v1692
        %1705 = vst [vmem:[%s236 + $0x20] sm:$0xff] %v1693
        %1706 = vst [vmem:[%s236 + $0x28] sm:$0xff] %v1694
        %1707 = vst [vmem:[%s236 + $0x30] sm:$0xff] %v1695
        %1708 = vst [vmem:[%s236 + $0x38] sm:$0xff] %v1696
        %1709 = vst [vmem:[%s236 + $0x40] sm:$0xff] %v1697
        %1710 = vst [vmem:[%s236 + $0x48] sm:$0xff] %v1698
        %1711 = vst [vmem:[%s236 + $0x50] sm:$0xff] %v1699
        %1712 = vst [vmem:[%s236 + $0x58] sm:$0xff] %v1700
        %1713 = vst [vmem:[%s243] sm:$0xff] %v1665
        %1714 = vst [vmem:[%s243 + $0x8] sm:$0xff] %v1666
        %1715 = vst [vmem:[%s243 + $0x10] sm:$0xff] %v1667
        %1716 = vst [vmem:[%s243 + $0x18] sm:$0xff] %v1668
        %1717 = vst [vmem:[%s243 + $0x20] sm:$0xff] %v1669
        %1718 = vst [vmem:[%s243 + $0x28] sm:$0xff] %v1670
        %1719 = vst [vmem:[%s243 + $0x30] sm:$0xff] %v1671
        %1720 = vst [vmem:[%s243 + $0x38] sm:$0xff] %v1672
        %1721 = vst [vmem:[%s243 + $0x40] sm:$0xff] %v1673
        %1722 = vst [vmem:[%s243 + $0x48] sm:$0xff] %v1674
        %1723 = vst [vmem:[%s243 + $0x50] sm:$0xff] %v1675
        %1724 = vst [vmem:[%s243 + $0x58] sm:$0xff] %v1676
        %s1725 = sand.u32 %s125, 1
        %s1726 = scalar_lea.sflag [#allocation3], %s1725
        %s1727 = sand.u32 %s125, 1
        %s1728 = smul.addr %s1727, 96
        %s1729 = scalar_lea.vmem [#allocation2], %s1728
        %s1730 = sand.u32 %s151, 1
        %s1731 = scalar_lea.sflag [#allocation5], %s1730
        %s1732 = sand.u32 %s151, 1
        %s1733 = smul.addr %s1732, 96
        %s1734 = scalar_lea.vmem [#allocation4], %s1733
        // Predicated region
        $region37: #{tpu_custom_call.1} parent=35 // pred_check
          %p1735 = pneg %p135
        $region38: #{tpu_custom_call.1} parent=35 // pred_check_branch
          %1737 = sbr.rel (%p1735) target = $region40
        $region39: #{tpu_custom_call.1} parent=35 // pred_region
          %1739 = vsyncadd %s1726, 0
          %s1740 = smul.addr %s23, 12
          %s1741 = smul.addr %s1740, 8
          %s1742 = scalar_lea.hbm %s4, %s1741
          %s1743 = sshll.u32 %s1729, 4
          %s1744 = int_to_ptr.vmem [resolvable:$true] %s1743
          %s1745 = sshll.u32 %s1742, 4
          %s1746 = int_to_ptr.hbm [resolvable:$true] %s1745
          %1751 = dma.vmem_to_hbm [thread:$0]  %s1744, 1536, %s1746, %s1726, 384, 384, 24
        $region40: #{tpu_custom_call.1} parent=35 // pred_fallthru
          _
        // Predicated region
        $region41: #{tpu_custom_call.1} parent=35 // pred_check
          %p1752 = pneg %p161
        $region42: #{tpu_custom_call.1} parent=35 // pred_check_branch
          %1754 = sbr.rel (%p1752) target = $region44
        $region43: #{tpu_custom_call.1} parent=35 // pred_region
          %1756 = vsyncadd %s1731, 0
          %s1757 = smul.addr %s23, 12
          %s1758 = smul.addr %s1757, 8
          %s1759 = scalar_lea.hbm %s5, %s1758
          %s1760 = sshll.u32 %s1734, 4
          %s1761 = int_to_ptr.vmem [resolvable:$true] %s1760
          %s1762 = sshll.u32 %s1759, 4
          %s1763 = int_to_ptr.hbm [resolvable:$true] %s1762
          %1768 = dma.vmem_to_hbm [thread:$0]  %s1761, 1536, %s1763, %s1731, 384, 384, 24
        $region44: #{tpu_custom_call.1} parent=35 // pred_fallthru
          _
      $region36: #{tpu_custom_call.1} parent=5 // pred_fallthru
        _
      %p1769 = scmp.le.s32.totalorder 2, %s18
      // Predicated region
      $region45: #{tpu_custom_call.1} parent=5 // pred_check
        %p1770 = pneg %p1769
      $region46: #{tpu_custom_call.1} parent=5 // pred_check_branch
        %1772 = sbr.rel (%p1770) target = $region48
      $region47: #{tpu_custom_call.1} parent=5 // pred_region
        %s1773 = ssub.s32 %s18, 2
        // Predicated region
        $region49: #{tpu_custom_call.1} parent=47 // pred_check
          %p1774 = pneg %p141
        $region50: #{tpu_custom_call.1} parent=47 // pred_check_branch
          %1776 = sbr.rel (%p1774) target = $region52
        $region51: #{tpu_custom_call.1} parent=47 // pred_region
          %s1777 = sand.u32 %s126, 1
          %s1778 = scalar_lea.sflag [#allocation3], %s1777
          %s1779 = sand.u32 %s126, 1
          %s1780 = smul.addr %s1779, 96
          %s1781 = scalar_lea.vmem [#allocation2], %s1780
          %1783 = dma.done %s1778, 1536
        $region52: #{tpu_custom_call.1} parent=47 // pred_fallthru
          _
        // Predicated region
        $region53: #{tpu_custom_call.1} parent=47 // pred_check
          %p1784 = pneg %p167
        $region54: #{tpu_custom_call.1} parent=47 // pred_check_branch
          %1786 = sbr.rel (%p1784) target = $region56
        $region55: #{tpu_custom_call.1} parent=47 // pred_region
          %s1787 = sand.u32 %s152, 1
          %s1788 = scalar_lea.sflag [#allocation5], %s1787
          %s1789 = sand.u32 %s152, 1
          %s1790 = smul.addr %s1789, 96
          %s1791 = scalar_lea.vmem [#allocation4], %s1790
          %1793 = dma.done %s1788, 1536
        $region56: #{tpu_custom_call.1} parent=47 // pred_fallthru
          _
      $region48: #{tpu_custom_call.1} parent=5 // pred_fallthru
        _
    $region6: #{tpu_custom_call.1} parent=1 // loop_footer
      %s22 = sadd.s32 1, %s18
    $region7: #{tpu_custom_call.1} parent=1 // loop_footer_branch
      %17 = sbr.rel target = $region3
    $region8: #{tpu_custom_call.1} parent=1 // loop_exit
      _
    %1794 = vsyncpa [#allocation3], 1
    %s1795 = scalar_lea.sflag [#allocation3], 1
    %1796 = vsyncpa %s1795, 1
    %1797 = vsyncpa [#allocation5], 1
    %s1798 = scalar_lea.sflag [#allocation5], 1
    %1799 = vsyncpa %s1798, 1

</llo_original>
